<compile_context>
chip_gen: v7x
topology: tpu7x:2x2x1
jax: 0.10.0
libtpu: 0.0.40
codegen_flags: <defaults>
</compile_context>

<pallas_src>
import math

import jax
import jax.numpy as jnp
from jax.experimental import pallas as pl
from jax.experimental.pallas import tpu as pltpu

TN_MAX = 4096   # points (lanes) per grid step
FP = 8          # harmonic frequencies padded to one sublane tile per channel


def _pick_tile(n):
    """Lane tile: multiple of 128, <= TN_MAX, aims for >=2 grid steps
    (keeps both v7x TensorCores fed via the 'parallel' grid axis)."""
    half = (n + 1) // 2
    t = ((half + 127) // 128) * 128
    return max(128, min(TN_MAX, t))


def nerf_kernel(x_ref, fr_ref, w0s_ref, w0c_ref, w0x_ref, b0_ref,
                w1_ref, b1_ref, w2a_ref, w2s_ref, w2c_ref, w2x_ref, b2_ref,
                w3_ref, b3_ref, wh_ref, bh_ref, out_ref):
    x24 = x_ref[...]                     # (24, TN): row 8c+f = x[c] (pre-replicated)
    e = x24 * fr_ref[...]                # (24, TN): x[c]*freq[f]; padded rows -> 0
    s = jnp.sin(e)                       # padded rows sin(0)=0 (zero weight cols)
    c = jnp.cos(e)                       # padded rows cos(0)=1 (zero weight cols)

    def mm(w_ref, a):
        return jnp.dot(w_ref[...], a, preferred_element_type=jnp.float32)

    # Layer 0: W0 @ [sin|cos|xyz] as three small matmuls — no concat copy.
    h = jnp.maximum(mm(w0s_ref, s) + mm(w0c_ref, c) + mm(w0x_ref, x24)
                    + b0_ref[...], 0.0)                                   # (H, TN)
    h = jnp.maximum(mm(w1_ref, h) + b1_ref[...], 0.0)
    # Layer 2 (input skip, append_xyz=(2,)): W2 @ [h|emb] split into
    # w2a@h + embed blocks — no (88, TN) materialization.
    h = jnp.maximum(mm(w2a_ref, h) + mm(w2s_ref, s) + mm(w2c_ref, c)
                    + mm(w2x_ref, x24) + b2_ref[...], 0.0)
    h = jnp.maximum(mm(w3_ref, h) + b3_ref[...], 0.0)

    # Fused heads padded to a full 8-row sublane tile (unmasked stores):
    # rows 0..2 = rgb (sigmoid), row 3 = density (relu), rows 4..7 = junk.
    logits = mm(wh_ref, h) + bh_ref[...]                                  # (8, TN)
    row = jax.lax.broadcasted_iota(jnp.int32, logits.shape, 0)
    out_ref[...] = jnp.where(row < 3, jax.nn.sigmoid(logits),
                             jnp.maximum(logits, 0.0))


def nerf_forward(sample_points, kparams):
    """sample_points: (..., 3) float32 -> {'density': (...,1), 'feature': (...,3)}"""
    lead = sample_points.shape[:-1]
    x = sample_points.reshape(-1, 3).astype(jnp.float32)
    n = x.shape[0]
    tn = _pick_tile(n)
    n_pad = pl.cdiv(n, tn) * tn

    # Layout plumbing in the wrapper: points on lanes; each xyz channel
    # replicated across its own 8-row sublane tile so the kernel never does
    # row slices, sublane broadcasts, or concats.
    x24 = jnp.zeros((3 * FP, n_pad), jnp.float32).at[:, :n].set(
        jnp.repeat(x.T, FP, axis=0))

    names = ("fr", "w0s", "w0c", "w0x", "b0", "w1", "b1",
             "w2a", "w2s", "w2c", "w2x", "b2", "w3", "b3", "wh", "bh")
    ws = [kparams[k] for k in names]

    def const_spec(a):
        # Constant index_map across the grid: weight tiles stay resident.
        # (pipeline_mode=pl.Buffered(1) would shave the double-buffer; skipped
        # as a minor win to keep the legacy grid-spec path maximally safe.)
        return pl.BlockSpec(a.shape, lambda i: (0, 0))

    out = pl.pallas_call(
        nerf_kernel,
        out_shape=jax.ShapeDtypeStruct((8, n_pad), jnp.float32),
        grid_spec=pltpu.PrefetchScalarGridSpec(
            num_scalar_prefetch=0,
            grid=(n_pad // tn,),
            in_specs=[pl.BlockSpec((3 * FP, tn), lambda i: (0, i))]
                     + [const_spec(a) for a in ws],
            out_specs=pl.BlockSpec((8, tn), lambda i: (0, i)),
        ),
        compiler_params=pltpu.CompilerParams(
            dimension_semantics=("parallel",),
            vmem_limit_bytes=32 * 1024 * 1024),
    )(x24, *ws)

    out = out[:, :n]                                    # (8, n) -> keep rows 0..3
    rgb = out[:3, :].T.reshape(*lead, 3)
    den = out[3:4, :].T.reshape(*lead, 1)
    return {"density": den, "feature": rgb}


# ----------------------- deterministic parameter setup -----------------------

def _xavier_uniform(key, dout, din):
    # matches torch.nn.init.xavier_uniform on a (dout, din) Linear weight
    bound = math.sqrt(6.0 / (din + dout))
    return jax.random.uniform(key, (dout, din), jnp.float32, -bound, bound)


def make_params(key, n_harm=6, hidden=32):
    """Torch-layout parameters (weights are (out_dim, in_dim))."""
    F = n_harm
    emb_dim = F * 2 * 3 + 3                                  # 39
    k0, k1, k2, k3, krgb, kden = jax.random.split(key, 6)

    def bias(d):
        return jnp.full((d,), 0.01, jnp.float32)             # bias.data.fill_(0.01)

    params = dict(
        w0=_xavier_uniform(k0, hidden, emb_dim),             # layer 0
        w1=_xavier_uniform(k1, hidden, hidden),              # layer 1
        w2=_xavier_uniform(k2, hidden, hidden + emb_dim),    # layer 2 (skip)
        w3=_xavier_uniform(k3, hidden, hidden),              # layer 3
        wrgb=_xavier_uniform(krgb, 3, hidden),
        wden=_xavier_uniform(kden, 1, hidden),
        b0=bias(hidden), b1=bias(hidden), b2=bias(hidden), b3=bias(hidden),
        brgb=bias(3), bden=bias(1),
    )
    freqs = 2.0 ** jnp.arange(F, dtype=jnp.float32)          # omega0=1.0, logspace
    return params, freqs


def _pack_embed_blocks(w_embed, n_harm):
    """(H, 6F+3) cols [sin(3F)|cos(3F)|x(3)] -> three (H, 24) padded blocks.

    Padded columns (f >= F) and non-anchor xyz columns stay exactly zero so the
    padded sin/cos rows (sin(0)=0, cos(0)=1) contribute nothing."""
    F = n_harm
    H = w_embed.shape[0]
    ws = jnp.zeros((H, 3 * FP), jnp.float32)
    wc = jnp.zeros((H, 3 * FP), jnp.float32)
    wx = jnp.zeros((H, 3 * FP), jnp.float32)
    for c in range(3):
        ws = ws.at[:, FP * c:FP * c + F].set(w_embed[:, F * c:F * c + F])
        wc = wc.at[:, FP * c:FP * c + F].set(
            w_embed[:, 3 * F + F * c:3 * F + F * c + F])
        wx = wx.at[:, FP * c].set(w_embed[:, 6 * F + c])   # x24 row 8c == x[c]
    return ws, wc, wx


def pack_params(params, freqs, n_harm=6, hidden=32):
    """Repack torch-layout params into the kernel's padded, split layout."""
    H = hidden
    fr8 = jnp.zeros((FP,), jnp.float32).at[:n_harm].set(freqs)
    fr = jnp.tile(fr8, 3).reshape(3 * FP, 1)                 # (24, 1)

    w0s, w0c, w0x = _pack_embed_blocks(params["w0"], n_harm)
    w2s, w2c, w2x = _pack_embed_blocks(params["w2"][:, H:], n_harm)

    wh = jnp.zeros((8, H), jnp.float32)
    wh = wh.at[:3].set(params["wrgb"]).at[3].set(params["wden"][0])
    bh = jnp.zeros((8, 1), jnp.float32)
    bh = bh.at[:3, 0].set(params["brgb"]).at[3, 0].set(params["bden"][0])

    return dict(
        fr=fr,
        w0s=w0s, w0c=w0c, w0x=w0x, b0=params["b0"].reshape(H, 1),
        w1=params["w1"], b1=params["b1"].reshape(H, 1),
        w2a=params["w2"][:, :H], w2s=w2s, w2c=w2c, w2x=w2x,
        b2=params["b2"].reshape(H, 1),
        w3=params["w3"], b3=params["b3"].reshape(H, 1),
        wh=wh, bh=bh,
    )


# ----------------------------- pure-JAX reference ----------------------------

def reference_forward(sample_points, params, freqs):
    x = sample_points.reshape(-1, 3)
    e = (x[..., None] * freqs).reshape(x.shape[0], -1)
    emb = jnp.concatenate([jnp.sin(e), jnp.cos(e), x], axis=-1)          # (N, 39)
    y = jnp.maximum(emb @ params["w0"].T + params["b0"], 0.0)
    y = jnp.maximum(y @ params["w1"].T + params["b1"], 0.0)
    y = jnp.maximum(jnp.concatenate([y, emb], axis=-1) @ params["w2"].T
                    + params["b2"], 0.0)
    y = jnp.maximum(y @ params["w3"].T + params["b3"], 0.0)
    rgb = jax.nn.sigmoid(y @ params["wrgb"].T + params["brgb"])
    den = jnp.maximum(y @ params["wden"].T + params["bden"], 0.0)
    lead = sample_points.shape[:-1]
    return rgb.reshape(*lead, 3), den.reshape(*lead, 1)


if __name__ == "__main__":
    # cfg: n_harmonic_functions_xyz=6, n_layers_xyz=4, n_hidden_neurons_xyz=32,
    #      append_xyz=(2,), n_harmonic_functions_dir=4 (dir embed unused).
    n_rays, n_samples = 4, 64
    key = jax.random.PRNGKey(0)
    k_xyz, k_dir, k_params = jax.random.split(key, 3)

    sample_points = jax.random.normal(k_xyz, (n_rays, n_samples, 3), jnp.float32)
    directions = jax.random.normal(k_dir, (n_rays, 3), jnp.float32)  # unused downstream

    params, freqs = make_params(k_params, n_harm=6, hidden=32)
    kparams = pack_params(params, freqs, n_harm=6, hidden=32)

    out = nerf_forward(sample_points, kparams)
    jax.block_until_ready(out)

    ref_rgb, ref_den = reference_forward(sample_points, params, freqs)
    assert out["feature"].shape == (n_rays, n_samples, 3)
    assert out["density"].shape == (n_rays, n_samples, 1)
    assert jnp.allclose(out["feature"], ref_rgb, atol=2e-5, rtol=2e-5)
    assert jnp.allclose(out["density"], ref_den, atol=2e-5, rtol=2e-5)

    print("KERNEL_OK")
</pallas_src>

<mosaic_0001>
module attributes {stable_mosaic.version = 11 : i64} {
  func.func @nerf_kernel(%arg0: i32, %arg1: memref<24x128xf32, #tpu.memory_space<vmem>>, %arg2: memref<24x1xf32, #tpu.memory_space<vmem>>, %arg3: memref<32x24xf32, #tpu.memory_space<vmem>>, %arg4: memref<32x24xf32, #tpu.memory_space<vmem>>, %arg5: memref<32x24xf32, #tpu.memory_space<vmem>>, %arg6: memref<32x1xf32, #tpu.memory_space<vmem>>, %arg7: memref<32x32xf32, #tpu.memory_space<vmem>>, %arg8: memref<32x1xf32, #tpu.memory_space<vmem>>, %arg9: memref<32x32xf32, #tpu.memory_space<vmem>>, %arg10: memref<32x24xf32, #tpu.memory_space<vmem>>, %arg11: memref<32x24xf32, #tpu.memory_space<vmem>>, %arg12: memref<32x24xf32, #tpu.memory_space<vmem>>, %arg13: memref<32x1xf32, #tpu.memory_space<vmem>>, %arg14: memref<32x32xf32, #tpu.memory_space<vmem>>, %arg15: memref<32x1xf32, #tpu.memory_space<vmem>>, %arg16: memref<8x32xf32, #tpu.memory_space<vmem>>, %arg17: memref<8x1xf32, #tpu.memory_space<vmem>>, %arg18: memref<8x128xf32, #tpu.memory_space<vmem>>) attributes {dimension_semantics = [#tpu.dimension_semantics<parallel>], iteration_bounds = array<i64: 2>, scalar_prefetch = 0 : i64, scratch_operands = 0 : i64, tpu.core_type = #tpu.core_type<tc>, window_params = [{transform_indices = @transform_0, window_bounds = array<i64: 24, 128>}, {pipeline_mode = #tpu.pipeline_mode<synchronous>, transform_indices = @transform_1, window_bounds = array<i64: 24, 1>}, {pipeline_mode = #tpu.pipeline_mode<synchronous>, transform_indices = @transform_2, window_bounds = array<i64: 32, 24>}, {pipeline_mode = #tpu.pipeline_mode<synchronous>, transform_indices = @transform_3, window_bounds = array<i64: 32, 24>}, {pipeline_mode = #tpu.pipeline_mode<synchronous>, transform_indices = @transform_4, window_bounds = array<i64: 32, 24>}, {pipeline_mode = #tpu.pipeline_mode<synchronous>, transform_indices = @transform_5, window_bounds = array<i64: 32, 1>}, {pipeline_mode = #tpu.pipeline_mode<synchronous>, transform_indices = @transform_6, window_bounds = array<i64: 32, 32>}, {pipeline_mode = #tpu.pipeline_mode<synchronous>, transform_indices = @transform_7, window_bounds = array<i64: 32, 1>}, {pipeline_mode = #tpu.pipeline_mode<synchronous>, transform_indices = @transform_8, window_bounds = array<i64: 32, 32>}, {pipeline_mode = #tpu.pipeline_mode<synchronous>, transform_indices = @transform_9, window_bounds = array<i64: 32, 24>}, {pipeline_mode = #tpu.pipeline_mode<synchronous>, transform_indices = @transform_10, window_bounds = array<i64: 32, 24>}, {pipeline_mode = #tpu.pipeline_mode<synchronous>, transform_indices = @transform_11, window_bounds = array<i64: 32, 24>}, {pipeline_mode = #tpu.pipeline_mode<synchronous>, transform_indices = @transform_12, window_bounds = array<i64: 32, 1>}, {pipeline_mode = #tpu.pipeline_mode<synchronous>, transform_indices = @transform_13, window_bounds = array<i64: 32, 32>}, {pipeline_mode = #tpu.pipeline_mode<synchronous>, transform_indices = @transform_14, window_bounds = array<i64: 32, 1>}, {pipeline_mode = #tpu.pipeline_mode<synchronous>, transform_indices = @transform_15, window_bounds = array<i64: 8, 32>}, {pipeline_mode = #tpu.pipeline_mode<synchronous>, transform_indices = @transform_16, window_bounds = array<i64: 8, 1>}, {transform_indices = @transform_17, window_bounds = array<i64: 8, 128>}]} {
    %c0 = arith.constant 0 : index
    %c0_0 = arith.constant 0 : index
    %0 = vector.load %arg1[%c0, %c0_0] : memref<24x128xf32, #tpu.memory_space<vmem>>, vector<24x128xf32>
    %c0_1 = arith.constant 0 : index
    %c0_2 = arith.constant 0 : index
    %1 = vector.load %arg2[%c0_1, %c0_2] : memref<24x1xf32, #tpu.memory_space<vmem>>, vector<24x1xf32>
    %2 = vector.broadcast %1 : vector<24x1xf32> to vector<24x128xf32>
    %3 = arith.mulf %0, %2 : vector<24x128xf32>
    %4 = math.sin %3 : vector<24x128xf32>
    %5 = math.cos %3 : vector<24x128xf32>
    %c0_3 = arith.constant 0 : index
    %c0_4 = arith.constant 0 : index
    %6 = vector.load %arg3[%c0_3, %c0_4] : memref<32x24xf32, #tpu.memory_space<vmem>>, vector<32x24xf32>
    %cst = arith.constant dense<0.000000e+00> : vector<32x128xf32>
    %7 = tpu.matmul %6, %4, %cst {dimension_numbers = #tpu.dot_dimension_numbers<[1], [0], [0], [1], [0, 0, 1, 1], [], []>} : vector<32x24xf32>, vector<24x128xf32>, vector<32x128xf32> -> vector<32x128xf32>
    %c0_5 = arith.constant 0 : index
    %c0_6 = arith.constant 0 : index
    %8 = vector.load %arg4[%c0_5, %c0_6] : memref<32x24xf32, #tpu.memory_space<vmem>>, vector<32x24xf32>
    %cst_7 = arith.constant dense<0.000000e+00> : vector<32x128xf32>
    %9 = tpu.matmul %8, %5, %cst_7 {dimension_numbers = #tpu.dot_dimension_numbers<[1], [0], [0], [1], [0, 0, 1, 1], [], []>} : vector<32x24xf32>, vector<24x128xf32>, vector<32x128xf32> -> vector<32x128xf32>
    %10 = arith.addf %7, %9 : vector<32x128xf32>
    %c0_8 = arith.constant 0 : index
    %c0_9 = arith.constant 0 : index
    %11 = vector.load %arg5[%c0_8, %c0_9] : memref<32x24xf32, #tpu.memory_space<vmem>>, vector<32x24xf32>
    %cst_10 = arith.constant dense<0.000000e+00> : vector<32x128xf32>
    %12 = tpu.matmul %11, %0, %cst_10 {dimension_numbers = #tpu.dot_dimension_numbers<[1], [0], [0], [1], [0, 0, 1, 1], [], []>} : vector<32x24xf32>, vector<24x128xf32>, vector<32x128xf32> -> vector<32x128xf32>
    %13 = arith.addf %10, %12 : vector<32x128xf32>
    %c0_11 = arith.constant 0 : index
    %c0_12 = arith.constant 0 : index
    %14 = vector.load %arg6[%c0_11, %c0_12] : memref<32x1xf32, #tpu.memory_space<vmem>>, vector<32x1xf32>
    %15 = vector.broadcast %14 : vector<32x1xf32> to vector<32x128xf32>
    %16 = arith.addf %13, %15 : vector<32x128xf32>
    %cst_13 = arith.constant 0.000000e+00 : f32
    %17 = vector.broadcast %cst_13 : f32 to vector<32x128xf32>
    %18 = arith.maximumf %16, %17 : vector<32x128xf32>
    %c0_14 = arith.constant 0 : index
    %c0_15 = arith.constant 0 : index
    %19 = vector.load %arg7[%c0_14, %c0_15] : memref<32x32xf32, #tpu.memory_space<vmem>>, vector<32x32xf32>
    %cst_16 = arith.constant dense<0.000000e+00> : vector<32x128xf32>
    %20 = tpu.matmul %19, %18, %cst_16 {dimension_numbers = #tpu.dot_dimension_numbers<[1], [0], [0], [1], [0, 0, 1, 1], [], []>} : vector<32x32xf32>, vector<32x128xf32>, vector<32x128xf32> -> vector<32x128xf32>
    %c0_17 = arith.constant 0 : index
    %c0_18 = arith.constant 0 : index
    %21 = vector.load %arg8[%c0_17, %c0_18] : memref<32x1xf32, #tpu.memory_space<vmem>>, vector<32x1xf32>
    %22 = vector.broadcast %21 : vector<32x1xf32> to vector<32x128xf32>
    %23 = arith.addf %20, %22 : vector<32x128xf32>
    %cst_19 = arith.constant 0.000000e+00 : f32
    %24 = vector.broadcast %cst_19 : f32 to vector<32x128xf32>
    %25 = arith.maximumf %23, %24 : vector<32x128xf32>
    %c0_20 = arith.constant 0 : index
    %c0_21 = arith.constant 0 : index
    %26 = vector.load %arg9[%c0_20, %c0_21] : memref<32x32xf32, #tpu.memory_space<vmem>>, vector<32x32xf32>
    %cst_22 = arith.constant dense<0.000000e+00> : vector<32x128xf32>
    %27 = tpu.matmul %26, %25, %cst_22 {dimension_numbers = #tpu.dot_dimension_numbers<[1], [0], [0], [1], [0, 0, 1, 1], [], []>} : vector<32x32xf32>, vector<32x128xf32>, vector<32x128xf32> -> vector<32x128xf32>
    %c0_23 = arith.constant 0 : index
    %c0_24 = arith.constant 0 : index
    %28 = vector.load %arg10[%c0_23, %c0_24] : memref<32x24xf32, #tpu.memory_space<vmem>>, vector<32x24xf32>
    %cst_25 = arith.constant dense<0.000000e+00> : vector<32x128xf32>
    %29 = tpu.matmul %28, %4, %cst_25 {dimension_numbers = #tpu.dot_dimension_numbers<[1], [0], [0], [1], [0, 0, 1, 1], [], []>} : vector<32x24xf32>, vector<24x128xf32>, vector<32x128xf32> -> vector<32x128xf32>
    %30 = arith.addf %27, %29 : vector<32x128xf32>
    %c0_26 = arith.constant 0 : index
    %c0_27 = arith.constant 0 : index
    %31 = vector.load %arg11[%c0_26, %c0_27] : memref<32x24xf32, #tpu.memory_space<vmem>>, vector<32x24xf32>
    %cst_28 = arith.constant dense<0.000000e+00> : vector<32x128xf32>
    %32 = tpu.matmul %31, %5, %cst_28 {dimension_numbers = #tpu.dot_dimension_numbers<[1], [0], [0], [1], [0, 0, 1, 1], [], []>} : vector<32x24xf32>, vector<24x128xf32>, vector<32x128xf32> -> vector<32x128xf32>
    %33 = arith.addf %30, %32 : vector<32x128xf32>
    %c0_29 = arith.constant 0 : index
    %c0_30 = arith.constant 0 : index
    %34 = vector.load %arg12[%c0_29, %c0_30] : memref<32x24xf32, #tpu.memory_space<vmem>>, vector<32x24xf32>
    %cst_31 = arith.constant dense<0.000000e+00> : vector<32x128xf32>
    %35 = tpu.matmul %34, %0, %cst_31 {dimension_numbers = #tpu.dot_dimension_numbers<[1], [0], [0], [1], [0, 0, 1, 1], [], []>} : vector<32x24xf32>, vector<24x128xf32>, vector<32x128xf32> -> vector<32x128xf32>
    %36 = arith.addf %33, %35 : vector<32x128xf32>
    %c0_32 = arith.constant 0 : index
    %c0_33 = arith.constant 0 : index
    %37 = vector.load %arg13[%c0_32, %c0_33] : memref<32x1xf32, #tpu.memory_space<vmem>>, vector<32x1xf32>
    %38 = vector.broadcast %37 : vector<32x1xf32> to vector<32x128xf32>
    %39 = arith.addf %36, %38 : vector<32x128xf32>
    %cst_34 = arith.constant 0.000000e+00 : f32
    %40 = vector.broadcast %cst_34 : f32 to vector<32x128xf32>
    %41 = arith.maximumf %39, %40 : vector<32x128xf32>
    %c0_35 = arith.constant 0 : index
    %c0_36 = arith.constant 0 : index
    %42 = vector.load %arg14[%c0_35, %c0_36] : memref<32x32xf32, #tpu.memory_space<vmem>>, vector<32x32xf32>
    %cst_37 = arith.constant dense<0.000000e+00> : vector<32x128xf32>
    %43 = tpu.matmul %42, %41, %cst_37 {dimension_numbers = #tpu.dot_dimension_numbers<[1], [0], [0], [1], [0, 0, 1, 1], [], []>} : vector<32x32xf32>, vector<32x128xf32>, vector<32x128xf32> -> vector<32x128xf32>
    %c0_38 = arith.constant 0 : index
    %c0_39 = arith.constant 0 : index
    %44 = vector.load %arg15[%c0_38, %c0_39] : memref<32x1xf32, #tpu.memory_space<vmem>>, vector<32x1xf32>
    %45 = vector.broadcast %44 : vector<32x1xf32> to vector<32x128xf32>
    %46 = arith.addf %43, %45 : vector<32x128xf32>
    %cst_40 = arith.constant 0.000000e+00 : f32
    %47 = vector.broadcast %cst_40 : f32 to vector<32x128xf32>
    %48 = arith.maximumf %46, %47 : vector<32x128xf32>
    %c0_41 = arith.constant 0 : index
    %c0_42 = arith.constant 0 : index
    %49 = vector.load %arg16[%c0_41, %c0_42] : memref<8x32xf32, #tpu.memory_space<vmem>>, vector<8x32xf32>
    %cst_43 = arith.constant dense<0.000000e+00> : vector<8x128xf32>
    %50 = tpu.matmul %49, %48, %cst_43 {dimension_numbers = #tpu.dot_dimension_numbers<[1], [0], [0], [1], [0, 0, 1, 1], [], []>} : vector<8x32xf32>, vector<32x128xf32>, vector<8x128xf32> -> vector<8x128xf32>
    %c0_44 = arith.constant 0 : index
    %c0_45 = arith.constant 0 : index
    %51 = vector.load %arg17[%c0_44, %c0_45] : memref<8x1xf32, #tpu.memory_space<vmem>>, vector<8x1xf32>
    %52 = vector.broadcast %51 : vector<8x1xf32> to vector<8x128xf32>
    %53 = arith.addf %50, %52 : vector<8x128xf32>
    %54 = tpu.iota {dimensions = array<i32: 0>} : vector<8x128xi32>
    %c3_i32 = arith.constant 3 : i32
    %55 = vector.broadcast %c3_i32 : i32 to vector<8x128xi32>
    %56 = arith.cmpi slt, %54, %55 : vector<8x128xi32>
    %57 = arith.negf %53 : vector<8x128xf32>
    %58 = math.exp %57 : vector<8x128xf32>
    %cst_46 = arith.constant 1.000000e+00 : f32
    %59 = vector.broadcast %cst_46 : f32 to vector<8x128xf32>
    %60 = arith.addf %59, %58 : vector<8x128xf32>
    %61 = arith.divf %59, %60 : vector<8x128xf32>
    %cst_47 = arith.constant 0.000000e+00 : f32
    %62 = vector.broadcast %cst_47 : f32 to vector<8x128xf32>
    %63 = arith.maximumf %53, %62 : vector<8x128xf32>
    %64 = arith.select %56, %61, %63 : vector<8x128xi1>, vector<8x128xf32>
    %c0_48 = arith.constant 0 : index
    %c0_49 = arith.constant 0 : index
    %65 = vector.load %arg18[%c0_48, %c0_49] : memref<8x128xf32, #tpu.memory_space<vmem>>, vector<8x128xf32>
    tpu.vector_store %arg18[%c0_48, %c0_49], %64 {strides = array<i32>} : memref<8x128xf32, #tpu.memory_space<vmem>>, vector<8x128xf32>,
    return
  }
  func.func @transform_0(%arg0: i32) -> (i32, i32) {
    %c0_i32 = arith.constant 0 : i32
    %c0_i32_0 = arith.constant 0 : i32
    return %c0_i32, %arg0 : i32, i32
  }
  func.func @transform_1(%arg0: i32) -> (i32, i32) {
    %c0_i32 = arith.constant 0 : i32
    %c0_i32_0 = arith.constant 0 : i32
    %c0_i32_1 = arith.constant 0 : i32
    return %c0_i32, %c0_i32_0 : i32, i32
  }
  func.func @transform_2(%arg0: i32) -> (i32, i32) {
    %c0_i32 = arith.constant 0 : i32
    %c0_i32_0 = arith.constant 0 : i32
    %c0_i32_1 = arith.constant 0 : i32
    return %c0_i32, %c0_i32_0 : i32, i32
  }
  func.func @transform_3(%arg0: i32) -> (i32, i32) {
    %c0_i32 = arith.constant 0 : i32
    %c0_i32_0 = arith.constant 0 : i32
    %c0_i32_1 = arith.constant 0 : i32
    return %c0_i32, %c0_i32_0 : i32, i32
  }
  func.func @transform_4(%arg0: i32) -> (i32, i32) {
    %c0_i32 = arith.constant 0 : i32
    %c0_i32_0 = arith.constant 0 : i32
    %c0_i32_1 = arith.constant 0 : i32
    return %c0_i32, %c0_i32_0 : i32, i32
  }
  func.func @transform_5(%arg0: i32) -> (i32, i32) {
    %c0_i32 = arith.constant 0 : i32
    %c0_i32_0 = arith.constant 0 : i32
    %c0_i32_1 = arith.constant 0 : i32
    return %c0_i32, %c0_i32_0 : i32, i32
  }
  func.func @transform_6(%arg0: i32) -> (i32, i32) {
    %c0_i32 = arith.constant 0 : i32
    %c0_i32_0 = arith.constant 0 : i32
    %c0_i32_1 = arith.constant 0 : i32
    return %c0_i32, %c0_i32_0 : i32, i32
  }
  func.func @transform_7(%arg0: i32) -> (i32, i32) {
    %c0_i32 = arith.constant 0 : i32
    %c0_i32_0 = arith.constant 0 : i32
    %c0_i32_1 = arith.constant 0 : i32
    return %c0_i32, %c0_i32_0 : i32, i32
  }
  func.func @transform_8(%arg0: i32) -> (i32, i32) {
    %c0_i32 = arith.constant 0 : i32
    %c0_i32_0 = arith.constant 0 : i32
    %c0_i32_1 = arith.constant 0 : i32
    return %c0_i32, %c0_i32_0 : i32, i32
  }
  func.func @transform_9(%arg0: i32) -> (i32, i32) {
    %c0_i32 = arith.constant 0 : i32
    %c0_i32_0 = arith.constant 0 : i32
    %c0_i32_1 = arith.constant 0 : i32
    return %c0_i32, %c0_i32_0 : i32, i32
  }
  func.func @transform_10(%arg0: i32) -> (i32, i32) {
    %c0_i32 = arith.constant 0 : i32
    %c0_i32_0 = arith.constant 0 : i32
    %c0_i32_1 = arith.constant 0 : i32
    return %c0_i32, %c0_i32_0 : i32, i32
  }
  func.func @transform_11(%arg0: i32) -> (i32, i32) {
    %c0_i32 = arith.constant 0 : i32
    %c0_i32_0 = arith.constant 0 : i32
    %c0_i32_1 = arith.constant 0 : i32
    return %c0_i32, %c0_i32_0 : i32, i32
  }
  func.func @transform_12(%arg0: i32) -> (i32, i32) {
    %c0_i32 = arith.constant 0 : i32
    %c0_i32_0 = arith.constant 0 : i32
    %c0_i32_1 = arith.constant 0 : i32
    return %c0_i32, %c0_i32_0 : i32, i32
  }
  func.func @transform_13(%arg0: i32) -> (i32, i32) {
    %c0_i32 = arith.constant 0 : i32
    %c0_i32_0 = arith.constant 0 : i32
    %c0_i32_1 = arith.constant 0 : i32
    return %c0_i32, %c0_i32_0 : i32, i32
  }
  func.func @transform_14(%arg0: i32) -> (i32, i32) {
    %c0_i32 = arith.constant 0 : i32
    %c0_i32_0 = arith.constant 0 : i32
    %c0_i32_1 = arith.constant 0 : i32
    return %c0_i32, %c0_i32_0 : i32, i32
  }
  func.func @transform_15(%arg0: i32) -> (i32, i32) {
    %c0_i32 = arith.constant 0 : i32
    %c0_i32_0 = arith.constant 0 : i32
    %c0_i32_1 = arith.constant 0 : i32
    return %c0_i32, %c0_i32_0 : i32, i32
  }
  func.func @transform_16(%arg0: i32) -> (i32, i32) {
    %c0_i32 = arith.constant 0 : i32
    %c0_i32_0 = arith.constant 0 : i32
    %c0_i32_1 = arith.constant 0 : i32
    return %c0_i32, %c0_i32_0 : i32, i32
  }
  func.func @transform_17(%arg0: i32) -> (i32, i32) {
    %c0_i32 = arith.constant 0 : i32
    %c0_i32_0 = arith.constant 0 : i32
    return %c0_i32, %arg0 : i32, i32
  }
}

</mosaic_0001>

<llo_original>
// kernel: tpu_custom_call.1
$region0: #{tpu_custom_call.1}
  #allocation0 [shape = 'u32[]', space=smem, size = 0x4, offset = 0x4, fixed_abs, tag = 'smem constant byte address 0x4 - core index']
  #allocation1 [shape = 'u32[144,128]{1,0:T(1,128)}', space=vmem, size = 0x12000, scoped, tag = 'internal scratch']
  %s0 = inlined_call_operand.vmem [shape: f32[24,256], index: 0, kind: input, shape index: {}]
  %s1 = inlined_call_operand.vmem [shape: f32[24,1], index: 1, kind: input, shape index: {}]
  %s2 = inlined_call_operand.vmem [shape: f32[32,24], index: 2, kind: input, shape index: {}]
  %s3 = inlined_call_operand.vmem [shape: f32[32,24], index: 3, kind: input, shape index: {}]
  %s4 = inlined_call_operand.vmem [shape: f32[32,24], index: 4, kind: input, shape index: {}]
  %s5 = inlined_call_operand.vmem [shape: f32[32,1], index: 5, kind: input, shape index: {}]
  %s6 = inlined_call_operand.vmem [shape: f32[32,32], index: 6, kind: input, shape index: {}]
  %s7 = inlined_call_operand.vmem [shape: f32[32,1], index: 7, kind: input, shape index: {}]
  %s8 = inlined_call_operand.vmem [shape: f32[32,32], index: 8, kind: input, shape index: {}]
  %s9 = inlined_call_operand.vmem [shape: f32[32,24], index: 9, kind: input, shape index: {}]
  %s10 = inlined_call_operand.vmem [shape: f32[32,24], index: 10, kind: input, shape index: {}]
  %s11 = inlined_call_operand.vmem [shape: f32[32,24], index: 11, kind: input, shape index: {}]
  %s12 = inlined_call_operand.vmem [shape: f32[32,1], index: 12, kind: input, shape index: {}]
  %s13 = inlined_call_operand.vmem [shape: f32[32,32], index: 13, kind: input, shape index: {}]
  %s14 = inlined_call_operand.vmem [shape: f32[32,1], index: 14, kind: input, shape index: {}]
  %s15 = inlined_call_operand.vmem [shape: f32[8,32], index: 15, kind: input, shape index: {}]
  %s16 = inlined_call_operand.vmem [shape: f32[8,1], index: 16, kind: input, shape index: {}]
  %s17 = inlined_call_operand.hbm [shape: f32[8,256], index: 17, kind: output, shape index: {}]
  %s18 = sld [smem:[#allocation0]]
  $region139: #{tpu_custom_call.1} parent=0
    _
  %s20 = ssub.s32 1, %s18
  %s21 = scalar_select 0, %s20, %s18
  $region1: #{tpu_custom_call.1} parent=0
    #allocation2 [shape = 'u8[24576]{0}', space=vmem, size = 0x6000, scoped, tag = 'input window, operand 0']
    #allocation3 [shape = 'u8[8192]{0}', space=vmem, size = 0x2000, scoped, tag = 'output window, operand 0']
    #allocation4 [shape = 's32[2]{0}', space=sflag, size = 0x8, scoped, tag = 'scoped memory for tpu_custom_call.1']
    %22 = vsyncpa [#allocation4], 0
    %s23 = scalar_lea.sflag [#allocation4], 1
    %24 = vsyncpa %s23, 0
    loop: start=0, step=1, limit=4
    $region2: #{tpu_custom_call.1} parent=1 // loop_pre_header
      _
    $region3: #{tpu_custom_call.1} parent=1 // loop_header
      %s26 = sphi 0, %s30
      %p27 = scmp.ge.s32.totalorder %s26, 4
      %s36 = sphi 0, %s38
      %s39 = sphi 0, %s36
      %s40 = sphi 0, %s39
      %s56 = sphi 0, %s40
      %s60 = sphi 0, %s60
      %s62 = sphi 0, %s60
      %s63 = sphi 0, %s62
      %s77 = sphi 0, %s63
      %s81 = sphi 0, %s81
      %s83 = sphi 0, %s81
      %s84 = sphi 0, %s83
      %s98 = sphi 0, %s84
      %s102 = sphi 0, %s102
      %s104 = sphi 0, %s102
      %s105 = sphi 0, %s104
      %s119 = sphi 0, %s105
      %s123 = sphi 0, %s123
      %s125 = sphi 0, %s123
      %s126 = sphi 0, %s125
      %s140 = sphi 0, %s126
      %s144 = sphi 0, %s144
      %s146 = sphi 0, %s144
      %s147 = sphi 0, %s146
      %s161 = sphi 0, %s147
      %s165 = sphi 0, %s165
      %s167 = sphi 0, %s165
      %s168 = sphi 0, %s167
      %s182 = sphi 0, %s168
      %s186 = sphi 0, %s186
      %s188 = sphi 0, %s186
      %s189 = sphi 0, %s188
      %s203 = sphi 0, %s189
      %s207 = sphi 0, %s207
      %s209 = sphi 0, %s207
      %s210 = sphi 0, %s209
      %s224 = sphi 0, %s210
      %s228 = sphi 0, %s228
      %s230 = sphi 0, %s228
      %s231 = sphi 0, %s230
      %s245 = sphi 0, %s231
      %s249 = sphi 0, %s249
      %s251 = sphi 0, %s249
      %s252 = sphi 0, %s251
      %s266 = sphi 0, %s252
      %s270 = sphi 0, %s270
      %s272 = sphi 0, %s270
      %s273 = sphi 0, %s272
      %s287 = sphi 0, %s273
      %s291 = sphi 0, %s291
      %s293 = sphi 0, %s291
      %s294 = sphi 0, %s293
      %s308 = sphi 0, %s294
      %s312 = sphi 0, %s312
      %s314 = sphi 0, %s312
      %s315 = sphi 0, %s314
      %s329 = sphi 0, %s315
      %s333 = sphi 0, %s333
      %s335 = sphi 0, %s333
      %s336 = sphi 0, %s335
      %s350 = sphi 0, %s336
      %s354 = sphi 0, %s354
      %s356 = sphi 0, %s354
      %s357 = sphi 0, %s356
      %s371 = sphi 0, %s357
      %s375 = sphi 0, %s375
      %s377 = sphi 0, %s375
      %s378 = sphi 0, %s377
      %s392 = sphi 0, %s378
      %s398 = sphi 0, %s400
      %s401 = sphi 0, %s398
      %s402 = sphi 0, %s401
      %s418 = sphi 0, %s402
    $region4: #{tpu_custom_call.1} parent=1 // loop_header_branch
      %29 = sbr.rel (%p27) target = $region8
    $region5: #{tpu_custom_call.1} parent=1 // loop_body
      %s31 = ssub.s32 %s26, 1
      %s32 = ssub.s32 %s26, 2
      %s33 = sadd.s32 %s26, 1
      %s34 = ssub.s32 %s26, %s33
      %p35 = scmp.eq.s32.totalorder %s34, 0
      %s37 = sadd.s32 %s36, 1
      %s38 = scalar_select %p35, %s36, %s37
      %p41 = pneg %p35
      %p42 = scmp.eq.s32.totalorder %s26, 1
      %p43 = por %p41, %p42
      %p44 = scmp.ne.s32.totalorder %s36, %s39
      %p45 = scmp.eq.s32.totalorder %s26, 0
      %p46 = por %p44, %p45
      %p47 = scmp.ne.s32.totalorder %s36, %s39
      %p48 = scmp.eq.s32.totalorder %s31, 1
      %p49 = por %p47, %p48
      %p50 = scmp.ne.s32.totalorder %s39, %s40
      %p51 = scmp.eq.s32.totalorder %s31, 0
      %p52 = por %p50, %p51
      %p53 = scmp.ne.s32.totalorder %s39, %s40
      %p54 = scmp.eq.s32.totalorder %s32, 1
      %p55 = por %p53, %p54
      %p57 = scmp.ne.s32.totalorder %s40, %s56
      %p58 = scmp.eq.s32.totalorder %s32, 0
      %p59 = por %p57, %p58
      %s61 = sadd.s32 %s60, 1
      %p64 = scmp.eq.s32.totalorder %s26, 1
      %p65 = scmp.ne.s32.totalorder %s60, %s62
      %p66 = scmp.eq.s32.totalorder %s26, 0
      %p67 = por %p65, %p66
      %p68 = scmp.ne.s32.totalorder %s60, %s62
      %p69 = scmp.eq.s32.totalorder %s31, 1
      %p70 = por %p68, %p69
      %p71 = scmp.ne.s32.totalorder %s62, %s63
      %p72 = scmp.eq.s32.totalorder %s31, 0
      %p73 = por %p71, %p72
      %p74 = scmp.ne.s32.totalorder %s62, %s63
      %p75 = scmp.eq.s32.totalorder %s32, 1
      %p76 = por %p74, %p75
      %p78 = scmp.ne.s32.totalorder %s63, %s77
      %p79 = scmp.eq.s32.totalorder %s32, 0
      %p80 = por %p78, %p79
      %s82 = sadd.s32 %s81, 1
      %p85 = scmp.eq.s32.totalorder %s26, 1
      %p86 = scmp.ne.s32.totalorder %s81, %s83
      %p87 = scmp.eq.s32.totalorder %s26, 0
      %p88 = por %p86, %p87
      %p89 = scmp.ne.s32.totalorder %s81, %s83
      %p90 = scmp.eq.s32.totalorder %s31, 1
      %p91 = por %p89, %p90
      %p92 = scmp.ne.s32.totalorder %s83, %s84
      %p93 = scmp.eq.s32.totalorder %s31, 0
      %p94 = por %p92, %p93
      %p95 = scmp.ne.s32.totalorder %s83, %s84
      %p96 = scmp.eq.s32.totalorder %s32, 1
      %p97 = por %p95, %p96
      %p99 = scmp.ne.s32.totalorder %s84, %s98
      %p100 = scmp.eq.s32.totalorder %s32, 0
      %p101 = por %p99, %p100
      %s103 = sadd.s32 %s102, 1
      %p106 = scmp.eq.s32.totalorder %s26, 1
      %p107 = scmp.ne.s32.totalorder %s102, %s104
      %p108 = scmp.eq.s32.totalorder %s26, 0
      %p109 = por %p107, %p108
      %p110 = scmp.ne.s32.totalorder %s102, %s104
      %p111 = scmp.eq.s32.totalorder %s31, 1
      %p112 = por %p110, %p111
      %p113 = scmp.ne.s32.totalorder %s104, %s105
      %p114 = scmp.eq.s32.totalorder %s31, 0
      %p115 = por %p113, %p114
      %p116 = scmp.ne.s32.totalorder %s104, %s105
      %p117 = scmp.eq.s32.totalorder %s32, 1
      %p118 = por %p116, %p117
      %p120 = scmp.ne.s32.totalorder %s105, %s119
      %p121 = scmp.eq.s32.totalorder %s32, 0
      %p122 = por %p120, %p121
      %s124 = sadd.s32 %s123, 1
      %p127 = scmp.eq.s32.totalorder %s26, 1
      %p128 = scmp.ne.s32.totalorder %s123, %s125
      %p129 = scmp.eq.s32.totalorder %s26, 0
      %p130 = por %p128, %p129
      %p131 = scmp.ne.s32.totalorder %s123, %s125
      %p132 = scmp.eq.s32.totalorder %s31, 1
      %p133 = por %p131, %p132
      %p134 = scmp.ne.s32.totalorder %s125, %s126
      %p135 = scmp.eq.s32.totalorder %s31, 0
      %p136 = por %p134, %p135
      %p137 = scmp.ne.s32.totalorder %s125, %s126
      %p138 = scmp.eq.s32.totalorder %s32, 1
      %p139 = por %p137, %p138
      %p141 = scmp.ne.s32.totalorder %s126, %s140
      %p142 = scmp.eq.s32.totalorder %s32, 0
      %p143 = por %p141, %p142
      %s145 = sadd.s32 %s144, 1
      %p148 = scmp.eq.s32.totalorder %s26, 1
      %p149 = scmp.ne.s32.totalorder %s144, %s146
      %p150 = scmp.eq.s32.totalorder %s26, 0
      %p151 = por %p149, %p150
      %p152 = scmp.ne.s32.totalorder %s144, %s146
      %p153 = scmp.eq.s32.totalorder %s31, 1
      %p154 = por %p152, %p153
      %p155 = scmp.ne.s32.totalorder %s146, %s147
      %p156 = scmp.eq.s32.totalorder %s31, 0
      %p157 = por %p155, %p156
      %p158 = scmp.ne.s32.totalorder %s146, %s147
      %p159 = scmp.eq.s32.totalorder %s32, 1
      %p160 = por %p158, %p159
      %p162 = scmp.ne.s32.totalorder %s147, %s161
      %p163 = scmp.eq.s32.totalorder %s32, 0
      %p164 = por %p162, %p163
      %s166 = sadd.s32 %s165, 1
      %p169 = scmp.eq.s32.totalorder %s26, 1
      %p170 = scmp.ne.s32.totalorder %s165, %s167
      %p171 = scmp.eq.s32.totalorder %s26, 0
      %p172 = por %p170, %p171
      %p173 = scmp.ne.s32.totalorder %s165, %s167
      %p174 = scmp.eq.s32.totalorder %s31, 1
      %p175 = por %p173, %p174
      %p176 = scmp.ne.s32.totalorder %s167, %s168
      %p177 = scmp.eq.s32.totalorder %s31, 0
      %p178 = por %p176, %p177
      %p179 = scmp.ne.s32.totalorder %s167, %s168
      %p180 = scmp.eq.s32.totalorder %s32, 1
      %p181 = por %p179, %p180
      %p183 = scmp.ne.s32.totalorder %s168, %s182
      %p184 = scmp.eq.s32.totalorder %s32, 0
      %p185 = por %p183, %p184
      %s187 = sadd.s32 %s186, 1
      %p190 = scmp.eq.s32.totalorder %s26, 1
      %p191 = scmp.ne.s32.totalorder %s186, %s188
      %p192 = scmp.eq.s32.totalorder %s26, 0
      %p193 = por %p191, %p192
      %p194 = scmp.ne.s32.totalorder %s186, %s188
      %p195 = scmp.eq.s32.totalorder %s31, 1
      %p196 = por %p194, %p195
      %p197 = scmp.ne.s32.totalorder %s188, %s189
      %p198 = scmp.eq.s32.totalorder %s31, 0
      %p199 = por %p197, %p198
      %p200 = scmp.ne.s32.totalorder %s188, %s189
      %p201 = scmp.eq.s32.totalorder %s32, 1
      %p202 = por %p200, %p201
      %p204 = scmp.ne.s32.totalorder %s189, %s203
      %p205 = scmp.eq.s32.totalorder %s32, 0
      %p206 = por %p204, %p205
      %s208 = sadd.s32 %s207, 1
      %p211 = scmp.eq.s32.totalorder %s26, 1
      %p212 = scmp.ne.s32.totalorder %s207, %s209
      %p213 = scmp.eq.s32.totalorder %s26, 0
      %p214 = por %p212, %p213
      %p215 = scmp.ne.s32.totalorder %s207, %s209
      %p216 = scmp.eq.s32.totalorder %s31, 1
      %p217 = por %p215, %p216
      %p218 = scmp.ne.s32.totalorder %s209, %s210
      %p219 = scmp.eq.s32.totalorder %s31, 0
      %p220 = por %p218, %p219
      %p221 = scmp.ne.s32.totalorder %s209, %s210
      %p222 = scmp.eq.s32.totalorder %s32, 1
      %p223 = por %p221, %p222
      %p225 = scmp.ne.s32.totalorder %s210, %s224
      %p226 = scmp.eq.s32.totalorder %s32, 0
      %p227 = por %p225, %p226
      %s229 = sadd.s32 %s228, 1
      %p232 = scmp.eq.s32.totalorder %s26, 1
      %p233 = scmp.ne.s32.totalorder %s228, %s230
      %p234 = scmp.eq.s32.totalorder %s26, 0
      %p235 = por %p233, %p234
      %p236 = scmp.ne.s32.totalorder %s228, %s230
      %p237 = scmp.eq.s32.totalorder %s31, 1
      %p238 = por %p236, %p237
      %p239 = scmp.ne.s32.totalorder %s230, %s231
      %p240 = scmp.eq.s32.totalorder %s31, 0
      %p241 = por %p239, %p240
      %p242 = scmp.ne.s32.totalorder %s230, %s231
      %p243 = scmp.eq.s32.totalorder %s32, 1
      %p244 = por %p242, %p243
      %p246 = scmp.ne.s32.totalorder %s231, %s245
      %p247 = scmp.eq.s32.totalorder %s32, 0
      %p248 = por %p246, %p247
      %s250 = sadd.s32 %s249, 1
      %p253 = scmp.eq.s32.totalorder %s26, 1
      %p254 = scmp.ne.s32.totalorder %s249, %s251
      %p255 = scmp.eq.s32.totalorder %s26, 0
      %p256 = por %p254, %p255
      %p257 = scmp.ne.s32.totalorder %s249, %s251
      %p258 = scmp.eq.s32.totalorder %s31, 1
      %p259 = por %p257, %p258
      %p260 = scmp.ne.s32.totalorder %s251, %s252
      %p261 = scmp.eq.s32.totalorder %s31, 0
      %p262 = por %p260, %p261
      %p263 = scmp.ne.s32.totalorder %s251, %s252
      %p264 = scmp.eq.s32.totalorder %s32, 1
      %p265 = por %p263, %p264
      %p267 = scmp.ne.s32.totalorder %s252, %s266
      %p268 = scmp.eq.s32.totalorder %s32, 0
      %p269 = por %p267, %p268
      %s271 = sadd.s32 %s270, 1
      %p274 = scmp.eq.s32.totalorder %s26, 1
      %p275 = scmp.ne.s32.totalorder %s270, %s272
      %p276 = scmp.eq.s32.totalorder %s26, 0
      %p277 = por %p275, %p276
      %p278 = scmp.ne.s32.totalorder %s270, %s272
      %p279 = scmp.eq.s32.totalorder %s31, 1
      %p280 = por %p278, %p279
      %p281 = scmp.ne.s32.totalorder %s272, %s273
      %p282 = scmp.eq.s32.totalorder %s31, 0
      %p283 = por %p281, %p282
      %p284 = scmp.ne.s32.totalorder %s272, %s273
      %p285 = scmp.eq.s32.totalorder %s32, 1
      %p286 = por %p284, %p285
      %p288 = scmp.ne.s32.totalorder %s273, %s287
      %p289 = scmp.eq.s32.totalorder %s32, 0
      %p290 = por %p288, %p289
      %s292 = sadd.s32 %s291, 1
      %p295 = scmp.eq.s32.totalorder %s26, 1
      %p296 = scmp.ne.s32.totalorder %s291, %s293
      %p297 = scmp.eq.s32.totalorder %s26, 0
      %p298 = por %p296, %p297
      %p299 = scmp.ne.s32.totalorder %s291, %s293
      %p300 = scmp.eq.s32.totalorder %s31, 1
      %p301 = por %p299, %p300
      %p302 = scmp.ne.s32.totalorder %s293, %s294
      %p303 = scmp.eq.s32.totalorder %s31, 0
      %p304 = por %p302, %p303
      %p305 = scmp.ne.s32.totalorder %s293, %s294
      %p306 = scmp.eq.s32.totalorder %s32, 1
      %p307 = por %p305, %p306
      %p309 = scmp.ne.s32.totalorder %s294, %s308
      %p310 = scmp.eq.s32.totalorder %s32, 0
      %p311 = por %p309, %p310
      %s313 = sadd.s32 %s312, 1
      %p316 = scmp.eq.s32.totalorder %s26, 1
      %p317 = scmp.ne.s32.totalorder %s312, %s314
      %p318 = scmp.eq.s32.totalorder %s26, 0
      %p319 = por %p317, %p318
      %p320 = scmp.ne.s32.totalorder %s312, %s314
      %p321 = scmp.eq.s32.totalorder %s31, 1
      %p322 = por %p320, %p321
      %p323 = scmp.ne.s32.totalorder %s314, %s315
      %p324 = scmp.eq.s32.totalorder %s31, 0
      %p325 = por %p323, %p324
      %p326 = scmp.ne.s32.totalorder %s314, %s315
      %p327 = scmp.eq.s32.totalorder %s32, 1
      %p328 = por %p326, %p327
      %p330 = scmp.ne.s32.totalorder %s315, %s329
      %p331 = scmp.eq.s32.totalorder %s32, 0
      %p332 = por %p330, %p331
      %s334 = sadd.s32 %s333, 1
      %p337 = scmp.eq.s32.totalorder %s26, 1
      %p338 = scmp.ne.s32.totalorder %s333, %s335
      %p339 = scmp.eq.s32.totalorder %s26, 0
      %p340 = por %p338, %p339
      %p341 = scmp.ne.s32.totalorder %s333, %s335
      %p342 = scmp.eq.s32.totalorder %s31, 1
      %p343 = por %p341, %p342
      %p344 = scmp.ne.s32.totalorder %s335, %s336
      %p345 = scmp.eq.s32.totalorder %s31, 0
      %p346 = por %p344, %p345
      %p347 = scmp.ne.s32.totalorder %s335, %s336
      %p348 = scmp.eq.s32.totalorder %s32, 1
      %p349 = por %p347, %p348
      %p351 = scmp.ne.s32.totalorder %s336, %s350
      %p352 = scmp.eq.s32.totalorder %s32, 0
      %p353 = por %p351, %p352
      %s355 = sadd.s32 %s354, 1
      %p358 = scmp.eq.s32.totalorder %s26, 1
      %p359 = scmp.ne.s32.totalorder %s354, %s356
      %p360 = scmp.eq.s32.totalorder %s26, 0
      %p361 = por %p359, %p360
      %p362 = scmp.ne.s32.totalorder %s354, %s356
      %p363 = scmp.eq.s32.totalorder %s31, 1
      %p364 = por %p362, %p363
      %p365 = scmp.ne.s32.totalorder %s356, %s357
      %p366 = scmp.eq.s32.totalorder %s31, 0
      %p367 = por %p365, %p366
      %p368 = scmp.ne.s32.totalorder %s356, %s357
      %p369 = scmp.eq.s32.totalorder %s32, 1
      %p370 = por %p368, %p369
      %p372 = scmp.ne.s32.totalorder %s357, %s371
      %p373 = scmp.eq.s32.totalorder %s32, 0
      %p374 = por %p372, %p373
      %s376 = sadd.s32 %s375, 1
      %p379 = scmp.eq.s32.totalorder %s26, 1
      %p380 = scmp.ne.s32.totalorder %s375, %s377
      %p381 = scmp.eq.s32.totalorder %s26, 0
      %p382 = por %p380, %p381
      %p383 = scmp.ne.s32.totalorder %s375, %s377
      %p384 = scmp.eq.s32.totalorder %s31, 1
      %p385 = por %p383, %p384
      %p386 = scmp.ne.s32.totalorder %s377, %s378
      %p387 = scmp.eq.s32.totalorder %s31, 0
      %p388 = por %p386, %p387
      %p389 = scmp.ne.s32.totalorder %s377, %s378
      %p390 = scmp.eq.s32.totalorder %s32, 1
      %p391 = por %p389, %p390
      %p393 = scmp.ne.s32.totalorder %s378, %s392
      %p394 = scmp.eq.s32.totalorder %s32, 0
      %p395 = por %p393, %p394
      %s396 = ssub.s32 %s26, %s33
      %p397 = scmp.eq.s32.totalorder %s396, 0
      %s399 = sadd.s32 %s398, 1
      %s400 = scalar_select %p397, %s398, %s399
      %p403 = pneg %p397
      %p404 = scmp.eq.s32.totalorder %s26, 1
      %p405 = por %p403, %p404
      %p406 = scmp.ne.s32.totalorder %s398, %s401
      %p407 = scmp.eq.s32.totalorder %s26, 0
      %p408 = por %p406, %p407
      %p409 = scmp.ne.s32.totalorder %s398, %s401
      %p410 = scmp.eq.s32.totalorder %s31, 1
      %p411 = por %p409, %p410
      %p412 = scmp.ne.s32.totalorder %s401, %s402
      %p413 = scmp.eq.s32.totalorder %s31, 0
      %p414 = por %p412, %p413
      %p415 = scmp.ne.s32.totalorder %s401, %s402
      %p416 = scmp.eq.s32.totalorder %s32, 1
      %p417 = por %p415, %p416
      %p419 = scmp.ne.s32.totalorder %s402, %s418
      %p420 = scmp.eq.s32.totalorder %s32, 0
      %p421 = por %p419, %p420
      %p422 = scmp.le.s32.totalorder 1, %s26
      %p423 = scmp.lt.s32.totalorder %s26, 3
      %p424 = pnand %p422, %p423
      %p425 = pneg %p424
      // Predicated region
      $region9: #{tpu_custom_call.1} parent=5 // pred_check
        _
      $region10: #{tpu_custom_call.1} parent=5 // pred_check_branch
        %427 = sbr.rel (%p424) target = $region12
      $region11: #{tpu_custom_call.1} parent=5 // pred_region
        %s428 = ssub.s32 %s26, 1
        // Predicated region
        $region13: #{tpu_custom_call.1} parent=11 // pred_check
          %p429 = pneg %p73
        $region14: #{tpu_custom_call.1} parent=11 // pred_check_branch
          %431 = sbr.rel (%p429) target = $region16
        $region15: #{tpu_custom_call.1} parent=11 // pred_region
          _
        $region16: #{tpu_custom_call.1} parent=11 // pred_fallthru
          _
        // Predicated region
        $region17: #{tpu_custom_call.1} parent=11 // pred_check
          %p432 = pneg %p94
        $region18: #{tpu_custom_call.1} parent=11 // pred_check_branch
          %434 = sbr.rel (%p432) target = $region20
        $region19: #{tpu_custom_call.1} parent=11 // pred_region
          _
        $region20: #{tpu_custom_call.1} parent=11 // pred_fallthru
          _
        // Predicated region
        $region21: #{tpu_custom_call.1} parent=11 // pred_check
          %p435 = pneg %p115
        $region22: #{tpu_custom_call.1} parent=11 // pred_check_branch
          %437 = sbr.rel (%p435) target = $region24
        $region23: #{tpu_custom_call.1} parent=11 // pred_region
          _
        $region24: #{tpu_custom_call.1} parent=11 // pred_fallthru
          _
        // Predicated region
        $region25: #{tpu_custom_call.1} parent=11 // pred_check
          %p438 = pneg %p136
        $region26: #{tpu_custom_call.1} parent=11 // pred_check_branch
          %440 = sbr.rel (%p438) target = $region28
        $region27: #{tpu_custom_call.1} parent=11 // pred_region
          _
        $region28: #{tpu_custom_call.1} parent=11 // pred_fallthru
          _
        // Predicated region
        $region29: #{tpu_custom_call.1} parent=11 // pred_check
          %p441 = pneg %p157
        $region30: #{tpu_custom_call.1} parent=11 // pred_check_branch
          %443 = sbr.rel (%p441) target = $region32
        $region31: #{tpu_custom_call.1} parent=11 // pred_region
          _
        $region32: #{tpu_custom_call.1} parent=11 // pred_fallthru
          _
        // Predicated region
        $region33: #{tpu_custom_call.1} parent=11 // pred_check
          %p444 = pneg %p178
        $region34: #{tpu_custom_call.1} parent=11 // pred_check_branch
          %446 = sbr.rel (%p444) target = $region36
        $region35: #{tpu_custom_call.1} parent=11 // pred_region
          _
        $region36: #{tpu_custom_call.1} parent=11 // pred_fallthru
          _
        // Predicated region
        $region37: #{tpu_custom_call.1} parent=11 // pred_check
          %p447 = pneg %p199
        $region38: #{tpu_custom_call.1} parent=11 // pred_check_branch
          %449 = sbr.rel (%p447) target = $region40
        $region39: #{tpu_custom_call.1} parent=11 // pred_region
          _
        $region40: #{tpu_custom_call.1} parent=11 // pred_fallthru
          _
        // Predicated region
        $region41: #{tpu_custom_call.1} parent=11 // pred_check
          %p450 = pneg %p220
        $region42: #{tpu_custom_call.1} parent=11 // pred_check_branch
          %452 = sbr.rel (%p450) target = $region44
        $region43: #{tpu_custom_call.1} parent=11 // pred_region
          _
        $region44: #{tpu_custom_call.1} parent=11 // pred_fallthru
          _
        // Predicated region
        $region45: #{tpu_custom_call.1} parent=11 // pred_check
          %p453 = pneg %p241
        $region46: #{tpu_custom_call.1} parent=11 // pred_check_branch
          %455 = sbr.rel (%p453) target = $region48
        $region47: #{tpu_custom_call.1} parent=11 // pred_region
          _
        $region48: #{tpu_custom_call.1} parent=11 // pred_fallthru
          _
        // Predicated region
        $region49: #{tpu_custom_call.1} parent=11 // pred_check
          %p456 = pneg %p262
        $region50: #{tpu_custom_call.1} parent=11 // pred_check_branch
          %458 = sbr.rel (%p456) target = $region52
        $region51: #{tpu_custom_call.1} parent=11 // pred_region
          _
        $region52: #{tpu_custom_call.1} parent=11 // pred_fallthru
          _
        // Predicated region
        $region53: #{tpu_custom_call.1} parent=11 // pred_check
          %p459 = pneg %p283
        $region54: #{tpu_custom_call.1} parent=11 // pred_check_branch
          %461 = sbr.rel (%p459) target = $region56
        $region55: #{tpu_custom_call.1} parent=11 // pred_region
          _
        $region56: #{tpu_custom_call.1} parent=11 // pred_fallthru
          _
        // Predicated region
        $region57: #{tpu_custom_call.1} parent=11 // pred_check
          %p462 = pneg %p304
        $region58: #{tpu_custom_call.1} parent=11 // pred_check_branch
          %464 = sbr.rel (%p462) target = $region60
        $region59: #{tpu_custom_call.1} parent=11 // pred_region
          _
        $region60: #{tpu_custom_call.1} parent=11 // pred_fallthru
          _
        // Predicated region
        $region61: #{tpu_custom_call.1} parent=11 // pred_check
          %p465 = pneg %p325
        $region62: #{tpu_custom_call.1} parent=11 // pred_check_branch
          %467 = sbr.rel (%p465) target = $region64
        $region63: #{tpu_custom_call.1} parent=11 // pred_region
          _
        $region64: #{tpu_custom_call.1} parent=11 // pred_fallthru
          _
        // Predicated region
        $region65: #{tpu_custom_call.1} parent=11 // pred_check
          %p468 = pneg %p346
        $region66: #{tpu_custom_call.1} parent=11 // pred_check_branch
          %470 = sbr.rel (%p468) target = $region68
        $region67: #{tpu_custom_call.1} parent=11 // pred_region
          _
        $region68: #{tpu_custom_call.1} parent=11 // pred_fallthru
          _
        // Predicated region
        $region69: #{tpu_custom_call.1} parent=11 // pred_check
          %p471 = pneg %p367
        $region70: #{tpu_custom_call.1} parent=11 // pred_check_branch
          %473 = sbr.rel (%p471) target = $region72
        $region71: #{tpu_custom_call.1} parent=11 // pred_region
          _
        $region72: #{tpu_custom_call.1} parent=11 // pred_fallthru
          _
        // Predicated region
        $region73: #{tpu_custom_call.1} parent=11 // pred_check
          %p474 = pneg %p388
        $region74: #{tpu_custom_call.1} parent=11 // pred_check_branch
          %476 = sbr.rel (%p474) target = $region76
        $region75: #{tpu_custom_call.1} parent=11 // pred_region
          _
        $region76: #{tpu_custom_call.1} parent=11 // pred_fallthru
          _
      $region12: #{tpu_custom_call.1} parent=5 // pred_fallthru
        _
      %p477 = scmp.lt.s32.totalorder %s26, 2
      // Predicated region
      $region77: #{tpu_custom_call.1} parent=5 // pred_check
        %p478 = pneg %p477
      $region78: #{tpu_custom_call.1} parent=5 // pred_check_branch
        %480 = sbr.rel (%p478) target = $region80
      $region79: #{tpu_custom_call.1} parent=5 // pred_region
        // Predicated region
        $region81: #{tpu_custom_call.1} parent=79 // pred_check
          %p481 = pneg %p46
        $region82: #{tpu_custom_call.1} parent=79 // pred_check_branch
          %483 = sbr.rel (%p481) target = $region84
        $region83: #{tpu_custom_call.1} parent=79 // pred_region
          %s484 = sand.u32 %s36, 1
          %s485 = sand.u32 %s36, 1
          %s486 = smul.addr %s485, 24
          %s487 = scalar_lea.vmem [#allocation2], %s486
          %s488 = smul.addr %s26, 8
          %s489 = scalar_lea.vmem %s0, %s488
          // Predicated region
          $region85: #{tpu_custom_call.1} parent=83 // pred_check
            _
          $region86: #{tpu_custom_call.1} parent=83 // pred_check_branch
            %491 = sbr.rel (0) target = $region88
          $region87: #{tpu_custom_call.1} parent=83 // pred_region
            // Predicated region
            $region89: #{tpu_custom_call.1} parent=87 // pred_check
              _
            $region90: #{tpu_custom_call.1} parent=87 // pred_check_branch
              %493 = sbr.rel (0) target = $region92
            $region91: #{tpu_custom_call.1} parent=87 // pred_region
              // Predicated region
              $region104: #{tpu_custom_call.1} parent=91 // pred_check
                _
              $region105: #{tpu_custom_call.1} parent=91 // pred_check_branch
                %512 = sbr.rel (0) target = $region107
              $region106: #{tpu_custom_call.1} parent=91 // pred_region
                loop: start=0, step=1, limit=1
                $region108: #{tpu_custom_call.1} parent=106 // loop_pre_header
                  _
                $region109: #{tpu_custom_call.1} parent=106 // loop_header
                  %s514 = sphi 0, %s518
                  %p515 = scmp.ge.s32.totalorder %s514, 1
                  %s519 = sphi %s489, %s489
                  %s520 = sphi %s487, %s487
                $region110: #{tpu_custom_call.1} parent=106 // loop_header_branch
                  %517 = sbr.rel (%p515) target = $region114
                $region111: #{tpu_custom_call.1} parent=106 // loop_body
                  %v521 = vld [vmem:[%s519] sm:$0xff]
                  %522 = vst [vmem:[%s520] sm:$0xff] %v521
                  %v523 = vld [vmem:[%s519 + $0x10] sm:$0xff]
                  %524 = vst [vmem:[%s520 + $0x8] sm:$0xff] %v523
                  %v525 = vld [vmem:[%s519 + $0x20] sm:$0xff]
                  %526 = vst [vmem:[%s520 + $0x10] sm:$0xff] %v525
                $region112: #{tpu_custom_call.1} parent=106 // loop_footer
                  %s518 = sadd.s32 1, %s514
                $region113: #{tpu_custom_call.1} parent=106 // loop_footer_branch
                  %513 = sbr.rel target = $region109
                $region114: #{tpu_custom_call.1} parent=106 // loop_exit
                  _
              $region107: #{tpu_custom_call.1} parent=91 // pred_fallthru
                _
              // Predicated region
              $region115: #{tpu_custom_call.1} parent=91 // pred_check
                _
              $region116: #{tpu_custom_call.1} parent=91 // pred_check_branch
                %528 = sbr.rel target = $region118
              $region117: #{tpu_custom_call.1} parent=91 // pred_region
                _
              $region118: #{tpu_custom_call.1} parent=91 // pred_fallthru
                _
            $region92: #{tpu_custom_call.1} parent=87 // pred_fallthru
              _
            // Predicated region
            $region93: #{tpu_custom_call.1} parent=87 // pred_check
              _
            $region94: #{tpu_custom_call.1} parent=87 // pred_check_branch
              %495 = sbr.rel target = $region96
            $region95: #{tpu_custom_call.1} parent=87 // pred_region
              loop: start=0, step=1, limit=1
              $region97: #{tpu_custom_call.1} parent=95 // loop_pre_header
                _
              $region98: #{tpu_custom_call.1} parent=95 // loop_header
                %s498 = sphi 0, %s502
                %p499 = scmp.ge.s32.totalorder %s498, 1
                %s503 = sphi %s489, %s489
                %s504 = sphi %s487, %s487
              $region99: #{tpu_custom_call.1} parent=95 // loop_header_branch
                %501 = sbr.rel (%p499) target = $region103
              $region100: #{tpu_custom_call.1} parent=95 // loop_body
                %v505 = vld [vmem:[%s503] sm:$0xff]
                %506 = vst [vmem:[%s504] sm:$0xff] %v505
                %v507 = vld [vmem:[%s503 + $0x10] sm:$0xff]
                %508 = vst [vmem:[%s504 + $0x8] sm:$0xff] %v507
                %v509 = vld [vmem:[%s503 + $0x20] sm:$0xff]
                %510 = vst [vmem:[%s504 + $0x10] sm:$0xff] %v509
              $region101: #{tpu_custom_call.1} parent=95 // loop_footer
                %s502 = sadd.s32 1, %s498
              $region102: #{tpu_custom_call.1} parent=95 // loop_footer_branch
                %497 = sbr.rel target = $region98
              $region103: #{tpu_custom_call.1} parent=95 // loop_exit
                _
            $region96: #{tpu_custom_call.1} parent=87 // pred_fallthru
              _
          $region88: #{tpu_custom_call.1} parent=83 // pred_fallthru
            _
          %529 = vnop
        $region84: #{tpu_custom_call.1} parent=79 // pred_fallthru
          _
      $region80: #{tpu_custom_call.1} parent=5 // pred_fallthru
        _
      %p530 = scmp.le.s32.totalorder 1, %s26
      %p531 = scmp.lt.s32.totalorder %s26, 3
      %p532 = pnand %p530, %p531
      %p533 = pneg %p532
      // Predicated region
      $region119: #{tpu_custom_call.1} parent=5 // pred_check
        _
      $region120: #{tpu_custom_call.1} parent=5 // pred_check_branch
        %535 = sbr.rel (%p532) target = $region122
      $region121: #{tpu_custom_call.1} parent=5 // pred_region
        %s536 = ssub.s32 %s26, 1
        %s537 = sand.u32 %s39, 1
        %s538 = sand.u32 %s39, 1
        %s539 = smul.addr %s538, 24
        %s540 = scalar_lea.vmem [#allocation2], %s539
        // Predicated region
        $region123: #{tpu_custom_call.1} parent=121 // pred_check
          %p541 = pneg %p52
        $region124: #{tpu_custom_call.1} parent=121 // pred_check_branch
          %543 = sbr.rel (%p541) target = $region126
        $region125: #{tpu_custom_call.1} parent=121 // pred_region
          _
        $region126: #{tpu_custom_call.1} parent=121 // pred_fallthru
          _
        %s544 = sand.u32 %s39, 1
        %s545 = sand.u32 %s39, 1
        %s546 = smul.addr %s545, 24
        %s547 = scalar_lea.vmem [#allocation2], %s546
        %p548 = pneg %p52
        %p549 = pneg %p49
        %p550 = pneg %p73
        %p551 = pneg %p70
        %p552 = pneg %p94
        %p553 = pneg %p91
        %p554 = pneg %p115
        %p555 = pneg %p112
        %p556 = pneg %p136
        %p557 = pneg %p133
        %p558 = pneg %p157
        %p559 = pneg %p154
        %p560 = pneg %p178
        %p561 = pneg %p175
        %p562 = pneg %p199
        %p563 = pneg %p196
        %p564 = pneg %p220
        %p565 = pneg %p217
        %p566 = pneg %p241
        %p567 = pneg %p238
        %p568 = pneg %p262
        %p569 = pneg %p259
        %p570 = pneg %p283
        %p571 = pneg %p280
        %p572 = pneg %p304
        %p573 = pneg %p301
        %p574 = pneg %p325
        %p575 = pneg %p322
        %p576 = pneg %p346
        %p577 = pneg %p343
        %p578 = pneg %p367
        %p579 = pneg %p364
        %p580 = pneg %p388
        %p581 = pneg %p385
        %p582 = pneg %p414
        %p583 = pneg %p411
        %s584 = sand.u32 %s401, 1
        %s585 = scalar_lea.sflag [#allocation4], %s584
        %s586 = sand.u32 %s401, 1
        %s587 = smul.addr %s586, 8
        %s588 = scalar_lea.vmem [#allocation3], %s587
        %v589 = vld [vmem:[%s540] sm:$0xff]
        %v590 = vld [vmem:[%s540 + $0x8] sm:$0xff]
        %v591 = vld [vmem:[%s540 + $0x10] sm:$0xff]
        %v592 = vld [vmem:[%s1] sm:$0xff]
        %v593 = vld [vmem:[%s1 + $0x8] sm:$0xff]
        %v594 = vld [vmem:[%s1 + $0x10] sm:$0xff]
        %596 = vset.pattern.permute.xlu0 0
        %597 = vperm.xlu0 %596, %v592
        %v598 = vpop.permute.xlu0 %597
        %601 = vset.pattern.permute.xlu0 0
        %602 = vperm.xlu0 %601, %v593
        %v603 = vpop.permute.xlu0 %602
        %606 = vset.pattern.permute.xlu0 0
        %607 = vperm.xlu0 %606, %v594
        %v608 = vpop.permute.xlu0 %607
        %v610 = vmul.f32 %v589, %v598
        %v611 = vmul.f32 %v590, %v603
        %v612 = vmul.f32 %v591, %v608
        %v613 = vand.u32 2147483647, %v610
        %vm614 = vcmp.le.f32.partialorder %v613, 0.7853982
        %vm615 = vcmp.lt.s32.totalorder %v610, 0
        %v616 = vand.u32 %v610, 2139095040
        %v617 = vshrl.u32 %v616, 23
        %v618 = vsub.s32 %v617, 127
        %v619 = vand.u32 2147483647, %v610
        %v620 = vand.u32 %v619, 8388607
        %v621 = vor.u32 %v620, 8388608
        %v622 = vsub.s32 0, %v621
        %v623 = vadd.s32 %v618, 1
        %vm624 = vcmp.gt.s32.totalorder %v623, 0
        %v625 = vsel %vm624, %v623, 0
        %v626 = vshrl.u32 %v625, 5
        %v627 = vand.u32 %v625, 31
        %v628 = vsub.s32 32, %v627
        %v629 = vshrl.u32 683565275, %v628
        %v630 = vshll.u32 683565275, %v627
        %v631 = vshrl.u32 2475754826, %v628
        %v632 = vor.u32 %v630, %v631
        %v633 = vshll.u32 2475754826, %v627
        %v634 = vshrl.u32 2131351028, %v628
        %v635 = vor.u32 %v633, %v634
        %v636 = vshll.u32 2131351028, %v627
        %v637 = vshrl.u32 2102212464, %v628
        %v638 = vor.u32 %v636, %v637
        %v639 = vshll.u32 2102212464, %v627
        %v640 = vshrl.u32 920167782, %v628
        %v641 = vor.u32 %v639, %v640
        %v642 = vshll.u32 920167782, %v627
        %v643 = vshrl.u32 1326507024, %v628
        %v644 = vor.u32 %v642, %v643
        %vm645 = vcmp.lt.s32.totalorder %v626, 1
        %vm646 = vcmp.lt.s32.totalorder %v626, 2
        %vm647 = vcmp.lt.s32.totalorder %v626, 3
        %vm648 = vcmp.lt.s32.totalorder %v626, 4
        %v649 = vsel %vm645, %v629, %v632
        %v650 = vsel %vm648, %v638, 2102212464
        %v651 = vsel %vm647, %v635, %v650
        %v652 = vsel %vm646, %v649, %v651
        %v653 = vsel %vm645, %v632, %v635
        %v654 = vsel %vm648, %v641, 920167782
        %v655 = vsel %vm647, %v638, %v654
        %v656 = vsel %vm646, %v653, %v655
        %v657 = vsel %vm645, %v635, %v638
        %v658 = vsel %vm648, %v644, 1326507024
        %v659 = vsel %vm647, %v641, %v658
        %v660 = vsel %vm646, %v657, %v659
        %v661 = vshll.u32 %v621, 8
        %v662 = vmul.u32.u64.compose %v661, %v660
        %v663 = vextract.low.u32 %v662
        %v664 = vextract.high.u32 %v662
        %v665 = vmul.u32.u64.compose %v661, %v656
        %v666 = vextract.low.u32 %v665
        %v667 = vextract.high.u32 %v665
        %v668 = vmul.u32 %v661, %v652
        %v669 = vadd.s32 %v664, %v666
        %vm670 = vc.u32 %v664, %v666
        %v671 = vadd.s32 %v667, 1
        %v672 = vsel %vm670, %v671, %v667
        %v673 = vadd.s32 %v668, %v672
        %v674 = vadd.s32 %v673, 536870912
        %v675 = vshrl.u32 %v674, 30
        %v676 = vshll.u32 %v675, 30
        %v677 = vsub.s32 %v673, %v676
        %vm678 = vcmp.lt.s32.totalorder %v677, 0
        %v679 = vsub.s32 0, %v677
        %v680 = vsel %vm678, %v679, %v677
        %v681 = vclz %v680
        %v682 = vsub.s32 %v681, 2
        %vm683 = vcmp.gt.s32.totalorder 0, %v682
        %v684 = vsel %vm683, 0, %v682
        %v685 = vsub.s32 32, %v684
        %v686 = vshll.u32 %v677, %v684
        %v687 = vshrl.u32 %v669, %v685
        %v688 = vor.u32 %v686, %v687
        %v689 = vsub.s32 4294967266, %v684
        %v690 = vadd.s32 %v689, 127
        %v691 = vshll.u32 %v690, 23
        %v692 = vor.u32 4788187, %v691
        %v693 = vand.u32 2147483647, %v692
        %v695 = vcvt.s32.f32 %v688
        %v696 = vmul.f32 %v695, %v693
        %v697 = vxor.u32 %v696, 2147483648
        %v698 = vsel %vm615, %v697, %v696
        %v699 = vsub.s32 4, %v675
        %v700 = vsel %vm615, %v699, %v675
        %v701 = vsel %vm614, %v610, %v698
        %v702 = vsel %vm614, 0, %v700
        %v703 = vcosq.f32.pop %v701
        %v704 = vsinq.f32.pop %v701
        %vm705 = vweird.f32 %v610
        %v706 = vadd.s32 %v702, 3
        %v707 = vand.u32 %v706, 3
        %vm708 = vcmp.lt.s32.totalorder %v707, 2
        %vm709 = vcmp.eq.s32.totalorder %v707, 0
        %v710 = vxor.u32 %v704, 2147483648
        %v711 = vsel %vm709, %v703, %v710
        %vm712 = vcmp.eq.s32.totalorder %v707, 2
        %v713 = vxor.u32 %v703, 2147483648
        %v714 = vsel %vm712, %v713, %v704
        %v715 = vsel %vm708, %v711, %v714
        %v716 = vsel %vm705, nan, %v715
        %v717 = vand.u32 2147483647, %v611
        %vm718 = vcmp.le.f32.partialorder %v717, 0.7853982
        %vm719 = vcmp.lt.s32.totalorder %v611, 0
        %v720 = vand.u32 %v611, 2139095040
        %v721 = vshrl.u32 %v720, 23
        %v722 = vsub.s32 %v721, 127
        %v723 = vand.u32 2147483647, %v611
        %v724 = vand.u32 %v723, 8388607
        %v725 = vor.u32 %v724, 8388608
        %v726 = vsub.s32 0, %v725
        %v727 = vadd.s32 %v722, 1
        %vm728 = vcmp.gt.s32.totalorder %v727, 0
        %v729 = vsel %vm728, %v727, 0
        %v730 = vshrl.u32 %v729, 5
        %v731 = vand.u32 %v729, 31
        %v732 = vsub.s32 32, %v731
        %v733 = vshrl.u32 683565275, %v732
        %v734 = vshll.u32 683565275, %v731
        %v735 = vshrl.u32 2475754826, %v732
        %v736 = vor.u32 %v734, %v735
        %v737 = vshll.u32 2475754826, %v731
        %v738 = vshrl.u32 2131351028, %v732
        %v739 = vor.u32 %v737, %v738
        %v740 = vshll.u32 2131351028, %v731
        %v741 = vshrl.u32 2102212464, %v732
        %v742 = vor.u32 %v740, %v741
        %v743 = vshll.u32 2102212464, %v731
        %v744 = vshrl.u32 920167782, %v732
        %v745 = vor.u32 %v743, %v744
        %v746 = vshll.u32 920167782, %v731
        %v747 = vshrl.u32 1326507024, %v732
        %v748 = vor.u32 %v746, %v747
        %vm749 = vcmp.lt.s32.totalorder %v730, 1
        %vm750 = vcmp.lt.s32.totalorder %v730, 2
        %vm751 = vcmp.lt.s32.totalorder %v730, 3
        %vm752 = vcmp.lt.s32.totalorder %v730, 4
        %v753 = vsel %vm749, %v733, %v736
        %v754 = vsel %vm752, %v742, 2102212464
        %v755 = vsel %vm751, %v739, %v754
        %v756 = vsel %vm750, %v753, %v755
        %v757 = vsel %vm749, %v736, %v739
        %v758 = vsel %vm752, %v745, 920167782
        %v759 = vsel %vm751, %v742, %v758
        %v760 = vsel %vm750, %v757, %v759
        %v761 = vsel %vm749, %v739, %v742
        %v762 = vsel %vm752, %v748, 1326507024
        %v763 = vsel %vm751, %v745, %v762
        %v764 = vsel %vm750, %v761, %v763
        %v765 = vshll.u32 %v725, 8
        %v766 = vmul.u32.u64.compose %v765, %v764
        %v767 = vextract.low.u32 %v766
        %v768 = vextract.high.u32 %v766
        %v769 = vmul.u32.u64.compose %v765, %v760
        %v770 = vextract.low.u32 %v769
        %v771 = vextract.high.u32 %v769
        %v772 = vmul.u32 %v765, %v756
        %v773 = vadd.s32 %v768, %v770
        %vm774 = vc.u32 %v768, %v770
        %v775 = vadd.s32 %v771, 1
        %v776 = vsel %vm774, %v775, %v771
        %v777 = vadd.s32 %v772, %v776
        %v778 = vadd.s32 %v777, 536870912
        %v779 = vshrl.u32 %v778, 30
        %v780 = vshll.u32 %v779, 30
        %v781 = vsub.s32 %v777, %v780
        %vm782 = vcmp.lt.s32.totalorder %v781, 0
        %v783 = vsub.s32 0, %v781
        %v784 = vsel %vm782, %v783, %v781
        %v785 = vclz %v784
        %v786 = vsub.s32 %v785, 2
        %vm787 = vcmp.gt.s32.totalorder 0, %v786
        %v788 = vsel %vm787, 0, %v786
        %v789 = vsub.s32 32, %v788
        %v790 = vshll.u32 %v781, %v788
        %v791 = vshrl.u32 %v773, %v789
        %v792 = vor.u32 %v790, %v791
        %v793 = vsub.s32 4294967266, %v788
        %v794 = vadd.s32 %v793, 127
        %v795 = vshll.u32 %v794, 23
        %v796 = vor.u32 4788187, %v795
        %v797 = vand.u32 2147483647, %v796
        %v799 = vcvt.s32.f32 %v792
        %v800 = vmul.f32 %v799, %v797
        %v801 = vxor.u32 %v800, 2147483648
        %v802 = vsel %vm719, %v801, %v800
        %v803 = vsub.s32 4, %v779
        %v804 = vsel %vm719, %v803, %v779
        %v805 = vsel %vm718, %v611, %v802
        %v806 = vsel %vm718, 0, %v804
        %v807 = vcosq.f32.pop %v805
        %v808 = vsinq.f32.pop %v805
        %vm809 = vweird.f32 %v611
        %v810 = vadd.s32 %v806, 3
        %v811 = vand.u32 %v810, 3
        %vm812 = vcmp.lt.s32.totalorder %v811, 2
        %vm813 = vcmp.eq.s32.totalorder %v811, 0
        %v814 = vxor.u32 %v808, 2147483648
        %v815 = vsel %vm813, %v807, %v814
        %vm816 = vcmp.eq.s32.totalorder %v811, 2
        %v817 = vxor.u32 %v807, 2147483648
        %v818 = vsel %vm816, %v817, %v808
        %v819 = vsel %vm812, %v815, %v818
        %v820 = vsel %vm809, nan, %v819
        %v821 = vand.u32 2147483647, %v612
        %vm822 = vcmp.le.f32.partialorder %v821, 0.7853982
        %vm823 = vcmp.lt.s32.totalorder %v612, 0
        %v824 = vand.u32 %v612, 2139095040
        %v825 = vshrl.u32 %v824, 23
        %v826 = vsub.s32 %v825, 127
        %v827 = vand.u32 2147483647, %v612
        %v828 = vand.u32 %v827, 8388607
        %v829 = vor.u32 %v828, 8388608
        %v830 = vsub.s32 0, %v829
        %v831 = vadd.s32 %v826, 1
        %vm832 = vcmp.gt.s32.totalorder %v831, 0
        %v833 = vsel %vm832, %v831, 0
        %v834 = vshrl.u32 %v833, 5
        %v835 = vand.u32 %v833, 31
        %v836 = vsub.s32 32, %v835
        %v837 = vshrl.u32 683565275, %v836
        %v838 = vshll.u32 683565275, %v835
        %v839 = vshrl.u32 2475754826, %v836
        %v840 = vor.u32 %v838, %v839
        %v841 = vshll.u32 2475754826, %v835
        %v842 = vshrl.u32 2131351028, %v836
        %v843 = vor.u32 %v841, %v842
        %v844 = vshll.u32 2131351028, %v835
        %v845 = vshrl.u32 2102212464, %v836
        %v846 = vor.u32 %v844, %v845
        %v847 = vshll.u32 2102212464, %v835
        %v848 = vshrl.u32 920167782, %v836
        %v849 = vor.u32 %v847, %v848
        %v850 = vshll.u32 920167782, %v835
        %v851 = vshrl.u32 1326507024, %v836
        %v852 = vor.u32 %v850, %v851
        %vm853 = vcmp.lt.s32.totalorder %v834, 1
        %vm854 = vcmp.lt.s32.totalorder %v834, 2
        %vm855 = vcmp.lt.s32.totalorder %v834, 3
        %vm856 = vcmp.lt.s32.totalorder %v834, 4
        %v857 = vsel %vm853, %v837, %v840
        %v858 = vsel %vm856, %v846, 2102212464
        %v859 = vsel %vm855, %v843, %v858
        %v860 = vsel %vm854, %v857, %v859
        %v861 = vsel %vm853, %v840, %v843
        %v862 = vsel %vm856, %v849, 920167782
        %v863 = vsel %vm855, %v846, %v862
        %v864 = vsel %vm854, %v861, %v863
        %v865 = vsel %vm853, %v843, %v846
        %v866 = vsel %vm856, %v852, 1326507024
        %v867 = vsel %vm855, %v849, %v866
        %v868 = vsel %vm854, %v865, %v867
        %v869 = vshll.u32 %v829, 8
        %v870 = vmul.u32.u64.compose %v869, %v868
        %v871 = vextract.low.u32 %v870
        %v872 = vextract.high.u32 %v870
        %v873 = vmul.u32.u64.compose %v869, %v864
        %v874 = vextract.low.u32 %v873
        %v875 = vextract.high.u32 %v873
        %v876 = vmul.u32 %v869, %v860
        %v877 = vadd.s32 %v872, %v874
        %vm878 = vc.u32 %v872, %v874
        %v879 = vadd.s32 %v875, 1
        %v880 = vsel %vm878, %v879, %v875
        %v881 = vadd.s32 %v876, %v880
        %v882 = vadd.s32 %v881, 536870912
        %v883 = vshrl.u32 %v882, 30
        %v884 = vshll.u32 %v883, 30
        %v885 = vsub.s32 %v881, %v884
        %vm886 = vcmp.lt.s32.totalorder %v885, 0
        %v887 = vsub.s32 0, %v885
        %v888 = vsel %vm886, %v887, %v885
        %v889 = vclz %v888
        %v890 = vsub.s32 %v889, 2
        %vm891 = vcmp.gt.s32.totalorder 0, %v890
        %v892 = vsel %vm891, 0, %v890
        %v893 = vsub.s32 32, %v892
        %v894 = vshll.u32 %v885, %v892
        %v895 = vshrl.u32 %v877, %v893
        %v896 = vor.u32 %v894, %v895
        %v897 = vsub.s32 4294967266, %v892
        %v898 = vadd.s32 %v897, 127
        %v899 = vshll.u32 %v898, 23
        %v900 = vor.u32 4788187, %v899
        %v901 = vand.u32 2147483647, %v900
        %v903 = vcvt.s32.f32 %v896
        %v904 = vmul.f32 %v903, %v901
        %v905 = vxor.u32 %v904, 2147483648
        %v906 = vsel %vm823, %v905, %v904
        %v907 = vsub.s32 4, %v883
        %v908 = vsel %vm823, %v907, %v883
        %v909 = vsel %vm822, %v612, %v906
        %v910 = vsel %vm822, 0, %v908
        %v911 = vcosq.f32.pop %v909
        %v912 = vsinq.f32.pop %v909
        %vm913 = vweird.f32 %v612
        %v914 = vadd.s32 %v910, 3
        %v915 = vand.u32 %v914, 3
        %vm916 = vcmp.lt.s32.totalorder %v915, 2
        %vm917 = vcmp.eq.s32.totalorder %v915, 0
        %v918 = vxor.u32 %v912, 2147483648
        %v919 = vsel %vm917, %v911, %v918
        %vm920 = vcmp.eq.s32.totalorder %v915, 2
        %v921 = vxor.u32 %v911, 2147483648
        %v922 = vsel %vm920, %v921, %v912
        %v923 = vsel %vm916, %v919, %v922
        %v924 = vsel %vm913, nan, %v923
        %v925 = vand.u32 2147483647, %v610
        %vm926 = vcmp.le.f32.partialorder %v925, 0.7853982
        %vm927 = vcmp.lt.s32.totalorder %v610, 0
        %v928 = vand.u32 %v610, 2139095040
        %v929 = vshrl.u32 %v928, 23
        %v930 = vsub.s32 %v929, 127
        %v931 = vand.u32 2147483647, %v610
        %v932 = vand.u32 %v931, 8388607
        %v933 = vor.u32 %v932, 8388608
        %v934 = vsub.s32 0, %v933
        %v935 = vadd.s32 %v930, 1
        %vm936 = vcmp.gt.s32.totalorder %v935, 0
        %v937 = vsel %vm936, %v935, 0
        %v938 = vshrl.u32 %v937, 5
        %v939 = vand.u32 %v937, 31
        %v940 = vsub.s32 32, %v939
        %v941 = vshrl.u32 683565275, %v940
        %v942 = vshll.u32 683565275, %v939
        %v943 = vshrl.u32 2475754826, %v940
        %v944 = vor.u32 %v942, %v943
        %v945 = vshll.u32 2475754826, %v939
        %v946 = vshrl.u32 2131351028, %v940
        %v947 = vor.u32 %v945, %v946
        %v948 = vshll.u32 2131351028, %v939
        %v949 = vshrl.u32 2102212464, %v940
        %v950 = vor.u32 %v948, %v949
        %v951 = vshll.u32 2102212464, %v939
        %v952 = vshrl.u32 920167782, %v940
        %v953 = vor.u32 %v951, %v952
        %v954 = vshll.u32 920167782, %v939
        %v955 = vshrl.u32 1326507024, %v940
        %v956 = vor.u32 %v954, %v955
        %vm957 = vcmp.lt.s32.totalorder %v938, 1
        %vm958 = vcmp.lt.s32.totalorder %v938, 2
        %vm959 = vcmp.lt.s32.totalorder %v938, 3
        %vm960 = vcmp.lt.s32.totalorder %v938, 4
        %v961 = vsel %vm957, %v941, %v944
        %v962 = vsel %vm960, %v950, 2102212464
        %v963 = vsel %vm959, %v947, %v962
        %v964 = vsel %vm958, %v961, %v963
        %v965 = vsel %vm957, %v944, %v947
        %v966 = vsel %vm960, %v953, 920167782
        %v967 = vsel %vm959, %v950, %v966
        %v968 = vsel %vm958, %v965, %v967
        %v969 = vsel %vm957, %v947, %v950
        %v970 = vsel %vm960, %v956, 1326507024
        %v971 = vsel %vm959, %v953, %v970
        %v972 = vsel %vm958, %v969, %v971
        %v973 = vshll.u32 %v933, 8
        %v974 = vmul.u32.u64.compose %v973, %v972
        %v975 = vextract.low.u32 %v974
        %v976 = vextract.high.u32 %v974
        %v977 = vmul.u32.u64.compose %v973, %v968
        %v978 = vextract.low.u32 %v977
        %v979 = vextract.high.u32 %v977
        %v980 = vmul.u32 %v973, %v964
        %v981 = vadd.s32 %v976, %v978
        %vm982 = vc.u32 %v976, %v978
        %v983 = vadd.s32 %v979, 1
        %v984 = vsel %vm982, %v983, %v979
        %v985 = vadd.s32 %v980, %v984
        %v986 = vadd.s32 %v985, 536870912
        %v987 = vshrl.u32 %v986, 30
        %v988 = vshll.u32 %v987, 30
        %v989 = vsub.s32 %v985, %v988
        %vm990 = vcmp.lt.s32.totalorder %v989, 0
        %v991 = vsub.s32 0, %v989
        %v992 = vsel %vm990, %v991, %v989
        %v993 = vclz %v992
        %v994 = vsub.s32 %v993, 2
        %vm995 = vcmp.gt.s32.totalorder 0, %v994
        %v996 = vsel %vm995, 0, %v994
        %v997 = vsub.s32 32, %v996
        %v998 = vshll.u32 %v989, %v996
        %v999 = vshrl.u32 %v981, %v997
        %v1000 = vor.u32 %v998, %v999
        %v1001 = vsub.s32 4294967266, %v996
        %v1002 = vadd.s32 %v1001, 127
        %v1003 = vshll.u32 %v1002, 23
        %v1004 = vor.u32 4788187, %v1003
        %v1005 = vand.u32 2147483647, %v1004
        %v1007 = vcvt.s32.f32 %v1000
        %v1008 = vmul.f32 %v1007, %v1005
        %v1009 = vxor.u32 %v1008, 2147483648
        %v1010 = vsel %vm927, %v1009, %v1008
        %v1011 = vsub.s32 4, %v987
        %v1012 = vsel %vm927, %v1011, %v987
        %v1013 = vsel %vm926, %v610, %v1010
        %v1014 = vsel %vm926, 0, %v1012
        %v1015 = vcosq.f32.pop %v1013
        %v1016 = vsinq.f32.pop %v1013
        %vm1017 = vweird.f32 %v610
        %v1018 = vand.u32 %v1014, 3
        %vm1019 = vcmp.lt.s32.totalorder %v1018, 2
        %vm1020 = vcmp.eq.s32.totalorder %v1018, 0
        %v1021 = vxor.u32 %v1016, 2147483648
        %v1022 = vsel %vm1020, %v1015, %v1021
        %vm1023 = vcmp.eq.s32.totalorder %v1018, 2
        %v1024 = vxor.u32 %v1015, 2147483648
        %v1025 = vsel %vm1023, %v1024, %v1016
        %v1026 = vsel %vm1019, %v1022, %v1025
        %v1027 = vsel %vm1017, nan, %v1026
        %v1028 = vand.u32 2147483647, %v611
        %vm1029 = vcmp.le.f32.partialorder %v1028, 0.7853982
        %vm1030 = vcmp.lt.s32.totalorder %v611, 0
        %v1031 = vand.u32 %v611, 2139095040
        %v1032 = vshrl.u32 %v1031, 23
        %v1033 = vsub.s32 %v1032, 127
        %v1034 = vand.u32 2147483647, %v611
        %v1035 = vand.u32 %v1034, 8388607
        %v1036 = vor.u32 %v1035, 8388608
        %v1037 = vsub.s32 0, %v1036
        %v1038 = vadd.s32 %v1033, 1
        %vm1039 = vcmp.gt.s32.totalorder %v1038, 0
        %v1040 = vsel %vm1039, %v1038, 0
        %v1041 = vshrl.u32 %v1040, 5
        %v1042 = vand.u32 %v1040, 31
        %v1043 = vsub.s32 32, %v1042
        %v1044 = vshrl.u32 683565275, %v1043
        %v1045 = vshll.u32 683565275, %v1042
        %v1046 = vshrl.u32 2475754826, %v1043
        %v1047 = vor.u32 %v1045, %v1046
        %v1048 = vshll.u32 2475754826, %v1042
        %v1049 = vshrl.u32 2131351028, %v1043
        %v1050 = vor.u32 %v1048, %v1049
        %v1051 = vshll.u32 2131351028, %v1042
        %v1052 = vshrl.u32 2102212464, %v1043
        %v1053 = vor.u32 %v1051, %v1052
        %v1054 = vshll.u32 2102212464, %v1042
        %v1055 = vshrl.u32 920167782, %v1043
        %v1056 = vor.u32 %v1054, %v1055
        %v1057 = vshll.u32 920167782, %v1042
        %v1058 = vshrl.u32 1326507024, %v1043
        %v1059 = vor.u32 %v1057, %v1058
        %vm1060 = vcmp.lt.s32.totalorder %v1041, 1
        %vm1061 = vcmp.lt.s32.totalorder %v1041, 2
        %vm1062 = vcmp.lt.s32.totalorder %v1041, 3
        %vm1063 = vcmp.lt.s32.totalorder %v1041, 4
        %v1064 = vsel %vm1060, %v1044, %v1047
        %v1065 = vsel %vm1063, %v1053, 2102212464
        %v1066 = vsel %vm1062, %v1050, %v1065
        %v1067 = vsel %vm1061, %v1064, %v1066
        %v1068 = vsel %vm1060, %v1047, %v1050
        %v1069 = vsel %vm1063, %v1056, 920167782
        %v1070 = vsel %vm1062, %v1053, %v1069
        %v1071 = vsel %vm1061, %v1068, %v1070
        %v1072 = vsel %vm1060, %v1050, %v1053
        %v1073 = vsel %vm1063, %v1059, 1326507024
        %v1074 = vsel %vm1062, %v1056, %v1073
        %v1075 = vsel %vm1061, %v1072, %v1074
        %v1076 = vshll.u32 %v1036, 8
        %v1077 = vmul.u32.u64.compose %v1076, %v1075
        %v1078 = vextract.low.u32 %v1077
        %v1079 = vextract.high.u32 %v1077
        %v1080 = vmul.u32.u64.compose %v1076, %v1071
        %v1081 = vextract.low.u32 %v1080
        %v1082 = vextract.high.u32 %v1080
        %v1083 = vmul.u32 %v1076, %v1067
        %v1084 = vadd.s32 %v1079, %v1081
        %vm1085 = vc.u32 %v1079, %v1081
        %v1086 = vadd.s32 %v1082, 1
        %v1087 = vsel %vm1085, %v1086, %v1082
        %v1088 = vadd.s32 %v1083, %v1087
        %v1089 = vadd.s32 %v1088, 536870912
        %v1090 = vshrl.u32 %v1089, 30
        %v1091 = vshll.u32 %v1090, 30
        %v1092 = vsub.s32 %v1088, %v1091
        %vm1093 = vcmp.lt.s32.totalorder %v1092, 0
        %v1094 = vsub.s32 0, %v1092
        %v1095 = vsel %vm1093, %v1094, %v1092
        %v1096 = vclz %v1095
        %v1097 = vsub.s32 %v1096, 2
        %vm1098 = vcmp.gt.s32.totalorder 0, %v1097
        %v1099 = vsel %vm1098, 0, %v1097
        %v1100 = vsub.s32 32, %v1099
        %v1101 = vshll.u32 %v1092, %v1099
        %v1102 = vshrl.u32 %v1084, %v1100
        %v1103 = vor.u32 %v1101, %v1102
        %v1104 = vsub.s32 4294967266, %v1099
        %v1105 = vadd.s32 %v1104, 127
        %v1106 = vshll.u32 %v1105, 23
        %v1107 = vor.u32 4788187, %v1106
        %v1108 = vand.u32 2147483647, %v1107
        %v1110 = vcvt.s32.f32 %v1103
        %v1111 = vmul.f32 %v1110, %v1108
        %v1112 = vxor.u32 %v1111, 2147483648
        %v1113 = vsel %vm1030, %v1112, %v1111
        %v1114 = vsub.s32 4, %v1090
        %v1115 = vsel %vm1030, %v1114, %v1090
        %v1116 = vsel %vm1029, %v611, %v1113
        %v1117 = vsel %vm1029, 0, %v1115
        %v1118 = vcosq.f32.pop %v1116
        %v1119 = vsinq.f32.pop %v1116
        %vm1120 = vweird.f32 %v611
        %v1121 = vand.u32 %v1117, 3
        %vm1122 = vcmp.lt.s32.totalorder %v1121, 2
        %vm1123 = vcmp.eq.s32.totalorder %v1121, 0
        %v1124 = vxor.u32 %v1119, 2147483648
        %v1125 = vsel %vm1123, %v1118, %v1124
        %vm1126 = vcmp.eq.s32.totalorder %v1121, 2
        %v1127 = vxor.u32 %v1118, 2147483648
        %v1128 = vsel %vm1126, %v1127, %v1119
        %v1129 = vsel %vm1122, %v1125, %v1128
        %v1130 = vsel %vm1120, nan, %v1129
        %v1131 = vand.u32 2147483647, %v612
        %vm1132 = vcmp.le.f32.partialorder %v1131, 0.7853982
        %vm1133 = vcmp.lt.s32.totalorder %v612, 0
        %v1134 = vand.u32 %v612, 2139095040
        %v1135 = vshrl.u32 %v1134, 23
        %v1136 = vsub.s32 %v1135, 127
        %v1137 = vand.u32 2147483647, %v612
        %v1138 = vand.u32 %v1137, 8388607
        %v1139 = vor.u32 %v1138, 8388608
        %v1140 = vsub.s32 0, %v1139
        %v1141 = vadd.s32 %v1136, 1
        %vm1142 = vcmp.gt.s32.totalorder %v1141, 0
        %v1143 = vsel %vm1142, %v1141, 0
        %v1144 = vshrl.u32 %v1143, 5
        %v1145 = vand.u32 %v1143, 31
        %v1146 = vsub.s32 32, %v1145
        %v1147 = vshrl.u32 683565275, %v1146
        %v1148 = vshll.u32 683565275, %v1145
        %v1149 = vshrl.u32 2475754826, %v1146
        %v1150 = vor.u32 %v1148, %v1149
        %v1151 = vshll.u32 2475754826, %v1145
        %v1152 = vshrl.u32 2131351028, %v1146
        %v1153 = vor.u32 %v1151, %v1152
        %v1154 = vshll.u32 2131351028, %v1145
        %v1155 = vshrl.u32 2102212464, %v1146
        %v1156 = vor.u32 %v1154, %v1155
        %v1157 = vshll.u32 2102212464, %v1145
        %v1158 = vshrl.u32 920167782, %v1146
        %v1159 = vor.u32 %v1157, %v1158
        %v1160 = vshll.u32 920167782, %v1145
        %v1161 = vshrl.u32 1326507024, %v1146
        %v1162 = vor.u32 %v1160, %v1161
        %vm1163 = vcmp.lt.s32.totalorder %v1144, 1
        %vm1164 = vcmp.lt.s32.totalorder %v1144, 2
        %vm1165 = vcmp.lt.s32.totalorder %v1144, 3
        %vm1166 = vcmp.lt.s32.totalorder %v1144, 4
        %v1167 = vsel %vm1163, %v1147, %v1150
        %v1168 = vsel %vm1166, %v1156, 2102212464
        %v1169 = vsel %vm1165, %v1153, %v1168
        %v1170 = vsel %vm1164, %v1167, %v1169
        %v1171 = vsel %vm1163, %v1150, %v1153
        %v1172 = vsel %vm1166, %v1159, 920167782
        %v1173 = vsel %vm1165, %v1156, %v1172
        %v1174 = vsel %vm1164, %v1171, %v1173
        %v1175 = vsel %vm1163, %v1153, %v1156
        %v1176 = vsel %vm1166, %v1162, 1326507024
        %v1177 = vsel %vm1165, %v1159, %v1176
        %v1178 = vsel %vm1164, %v1175, %v1177
        %v1179 = vshll.u32 %v1139, 8
        %v1180 = vmul.u32.u64.compose %v1179, %v1178
        %v1181 = vextract.low.u32 %v1180
        %v1182 = vextract.high.u32 %v1180
        %v1183 = vmul.u32.u64.compose %v1179, %v1174
        %v1184 = vextract.low.u32 %v1183
        %v1185 = vextract.high.u32 %v1183
        %v1186 = vmul.u32 %v1179, %v1170
        %v1187 = vadd.s32 %v1182, %v1184
        %vm1188 = vc.u32 %v1182, %v1184
        %v1189 = vadd.s32 %v1185, 1
        %v1190 = vsel %vm1188, %v1189, %v1185
        %v1191 = vadd.s32 %v1186, %v1190
        %v1192 = vadd.s32 %v1191, 536870912
        %v1193 = vshrl.u32 %v1192, 30
        %v1194 = vshll.u32 %v1193, 30
        %v1195 = vsub.s32 %v1191, %v1194
        %vm1196 = vcmp.lt.s32.totalorder %v1195, 0
        %v1197 = vsub.s32 0, %v1195
        %v1198 = vsel %vm1196, %v1197, %v1195
        %v1199 = vclz %v1198
        %v1200 = vsub.s32 %v1199, 2
        %vm1201 = vcmp.gt.s32.totalorder 0, %v1200
        %v1202 = vsel %vm1201, 0, %v1200
        %v1203 = vsub.s32 32, %v1202
        %v1204 = vshll.u32 %v1195, %v1202
        %v1205 = vshrl.u32 %v1187, %v1203
        %v1206 = vor.u32 %v1204, %v1205
        %v1207 = vsub.s32 4294967266, %v1202
        %v1208 = vadd.s32 %v1207, 127
        %v1209 = vshll.u32 %v1208, 23
        %v1210 = vor.u32 4788187, %v1209
        %v1211 = vand.u32 2147483647, %v1210
        %v1213 = vcvt.s32.f32 %v1206
        %v1214 = vmul.f32 %v1213, %v1211
        %v1215 = vxor.u32 %v1214, 2147483648
        %v1216 = vsel %vm1133, %v1215, %v1214
        %v1217 = vsub.s32 4, %v1193
        %v1218 = vsel %vm1133, %v1217, %v1193
        %v1219 = vsel %vm1132, %v612, %v1216
        %v1220 = vsel %vm1132, 0, %v1218
        %v1221 = vcosq.f32.pop %v1219
        %v1222 = vsinq.f32.pop %v1219
        %vm1223 = vweird.f32 %v612
        %v1224 = vand.u32 %v1220, 3
        %vm1225 = vcmp.lt.s32.totalorder %v1224, 2
        %vm1226 = vcmp.eq.s32.totalorder %v1224, 0
        %v1227 = vxor.u32 %v1222, 2147483648
        %v1228 = vsel %vm1226, %v1221, %v1227
        %vm1229 = vcmp.eq.s32.totalorder %v1224, 2
        %v1230 = vxor.u32 %v1221, 2147483648
        %v1231 = vsel %vm1229, %v1230, %v1222
        %v1232 = vsel %vm1225, %v1228, %v1231
        %v1233 = vsel %vm1223, nan, %v1232
        %v1234 = vld [vmem:[%s2] sm:$0xff]
        %v1235 = vld [vmem:[%s2 + $0x8] sm:$0xff]
        %v1236 = vld [vmem:[%s2 + $0x10] sm:$0xff]
        %v1237 = vld [vmem:[%s2 + $0x18] sm:$0xff]
        %v1238 = vld [vmem:[%s3] sm:$0xff]
        %v1239 = vld [vmem:[%s3 + $0x8] sm:$0xff]
        %v1240 = vld [vmem:[%s3 + $0x10] sm:$0xff]
        %v1241 = vld [vmem:[%s3 + $0x18] sm:$0xff]
        %vm1242 = vcmask 195584
        %v1244 = vsel %vm1242, %v1238, 0
        %v1247 = vsel %vm1242, %v1239, 0
        %v1250 = vsel %vm1242, %v1240, 0
        %v1253 = vsel %vm1242, %v1241, 0
        %1255 = vmatprep.subr.mxu0 0.0
        %1256 = vmatpush1.msra.mxu0 %v1027
        %1257 = vmatprep.subr.mxu0 0.0
        %1258 = vmatpush1.msra.mxu0 %v1130
        %1259 = vmatprep.subr.mxu0 0.0
        %1260 = vmatpush1.msra.mxu0 %v1233
        %1261 = vmatprep.subr.mxu0 0.0
        %1262 = vmatpush1.msra.mxu0 0.0
        %1263 = vmatprep.subr.mxu0 0.0
        %1264 = vmatpush1.msra.mxu0 0.0
        %1265 = vmatprep.subr.mxu0 0.0
        %1266 = vmatpush1.msra.mxu0 0.0
        %1267 = vmatprep.subr.mxu0 0.0
        %1268 = vmatpush1.msra.mxu0 0.0
        %1269 = vmatprep.subr.mxu0 0.0
        %1270 = vmatpush1.msra.mxu0 0.0
        %1271 = vmatprep.subr.mxu0 0.0
        %1272 = vmatpush1.msra.mxu0 0.0
        %1273 = vmatprep.subr.mxu0 0.0
        %1274 = vmatpush1.msra.mxu0 0.0
        %1275 = vmatprep.subr.mxu0 0.0
        %1276 = vmatpush1.msra.mxu0 0.0
        %1277 = vmatprep.subr.mxu0 0.0
        %1278 = vmatpush1.msra.mxu0 0.0
        %1279 = vmatprep.subr.mxu0 0.0
        %1280 = vmatpush1.msra.mxu0 0.0
        %1281 = vmatprep.subr.mxu0 0.0
        %1282 = vmatpush1.msra.mxu0 0.0
        %1283 = vmatprep.subr.mxu0 0.0
        %1284 = vmatpush1.msra.mxu0 0.0
        %1285 = vmatprep.subr.mxu0 0.0
        %1286 = vmatpush1.msra.mxu0 0.0
        %1287 = vmatprep.subr.mxu0 0.0
        %1288 = vmatpush1.msra.mxu0 0.0
        %1289 = vmatprep.subr.mxu0 0.0
        %1290 = vmatpush1.msra.mxu0 0.0
        %1291 = vmatprep.subr.mxu0 0.0
        %1292 = vmatpush1.msra.mxu0 0.0
        %1293 = vmatprep.subr.mxu0 0.0
        %1294 = vmatpush1.msra.mxu0 0.0
        %1295 = vmatprep.subr.mxu0 0.0
        %1296 = vmatpush1.msra.mxu0 0.0
        %1297 = vmatprep.subr.mxu0 0.0
        %1298 = vmatpush1.msra.mxu0 0.0
        %1299 = vmatprep.subr.mxu0 0.0
        %1300 = vmatpush1.msra.mxu0 0.0
        %1301 = vmatprep.subr.mxu0 0.0
        %1302 = vmatpush1.msra.mxu0 0.0
        %1303 = vmatprep.subr.mxu0 0.0
        %1304 = vmatpush1.msra.mxu0 0.0
        %1305 = vmatprep.subr.mxu0 0.0
        %1306 = vmatpush1.msra.mxu0 0.0
        %1307 = vmatprep.subr.mxu0 0.0
        %1308 = vmatpush1.msra.mxu0 0.0
        %1309 = vmatprep.subr.mxu0 0.0
        %1310 = vmatpush1.msra.mxu0 0.0
        %1311 = vmatprep.subr.mxu0 0.0
        %1312 = vmatpush1.msra.mxu0 0.0
        %1313 = vmatprep.subr.mxu0 0.0
        %1314 = vmatpush1.msra.mxu0 0.0
        %1315 = vmatprep.subr.mxu0 0.0
        %1316 = vmatpush1.msra.mxu0 0.0
        %1317 = vmatprep.subr.mxu0 0.0
        %1318 = vmatpush1.msra.mxu0 0.0
        %1319 = vmatprep.mubr.f32.mxu0 0.0
        %1320 = vmatmul.mubr.f32.gmra.mrb[0].mxu0 %v1244
        %v1321 = vpop.f32.mrb[0].mxu0
        %v1322 = vadd.f32 0.0, %v1321
        %v1323 = vpop.f32.mrb[0].mxu0
        %1324 = vmatprep.mubr.f32.mxu0 0.0
        %1325 = vmatmul.mubr.f32.gmra.mrb[0].mxu0 %v1247
        %v1326 = vpop.f32.mrb[0].mxu0
        %v1327 = vadd.f32 0.0, %v1326
        %v1328 = vpop.f32.mrb[0].mxu0
        %1329 = vmatprep.mubr.f32.mxu0 0.0
        %1330 = vmatmul.mubr.f32.gmra.mrb[0].mxu0 %v1250
        %v1331 = vpop.f32.mrb[0].mxu0
        %v1332 = vadd.f32 0.0, %v1331
        %v1333 = vpop.f32.mrb[0].mxu0
        %1334 = vmatprep.mubr.f32.mxu0 0.0
        %1335 = vmatmul.mubr.f32.gmra.mrb[0].mxu0 %v1253
        %v1336 = vpop.f32.mrb[0].mxu0
        %v1337 = vadd.f32 0.0, %v1336
        %v1338 = vpop.f32.mrb[0].mxu0
        %1339 = vdwg.mxu0
        %v1341 = vsel %vm1242, %v1234, 0
        %v1344 = vsel %vm1242, %v1235, 0
        %v1347 = vsel %vm1242, %v1236, 0
        %v1350 = vsel %vm1242, %v1237, 0
        %1352 = vmatprep.subr.mxu0 0.0
        %1353 = vmatpush1.msra.mxu0 %v716
        %1354 = vmatprep.subr.mxu0 0.0
        %1355 = vmatpush1.msra.mxu0 %v820
        %1356 = vmatprep.subr.mxu0 0.0
        %1357 = vmatpush1.msra.mxu0 %v924
        %1358 = vmatprep.subr.mxu0 0.0
        %1359 = vmatpush1.msra.mxu0 0.0
        %1360 = vmatprep.subr.mxu0 0.0
        %1361 = vmatpush1.msra.mxu0 0.0
        %1362 = vmatprep.subr.mxu0 0.0
        %1363 = vmatpush1.msra.mxu0 0.0
        %1364 = vmatprep.subr.mxu0 0.0
        %1365 = vmatpush1.msra.mxu0 0.0
        %1366 = vmatprep.subr.mxu0 0.0
        %1367 = vmatpush1.msra.mxu0 0.0
        %1368 = vmatprep.subr.mxu0 0.0
        %1369 = vmatpush1.msra.mxu0 0.0
        %1370 = vmatprep.subr.mxu0 0.0
        %1371 = vmatpush1.msra.mxu0 0.0
        %1372 = vmatprep.subr.mxu0 0.0
        %1373 = vmatpush1.msra.mxu0 0.0
        %1374 = vmatprep.subr.mxu0 0.0
        %1375 = vmatpush1.msra.mxu0 0.0
        %1376 = vmatprep.subr.mxu0 0.0
        %1377 = vmatpush1.msra.mxu0 0.0
        %1378 = vmatprep.subr.mxu0 0.0
        %1379 = vmatpush1.msra.mxu0 0.0
        %1380 = vmatprep.subr.mxu0 0.0
        %1381 = vmatpush1.msra.mxu0 0.0
        %1382 = vmatprep.subr.mxu0 0.0
        %1383 = vmatpush1.msra.mxu0 0.0
        %1384 = vmatprep.subr.mxu0 0.0
        %1385 = vmatpush1.msra.mxu0 0.0
        %1386 = vmatprep.subr.mxu0 0.0
        %1387 = vmatpush1.msra.mxu0 0.0
        %1388 = vmatprep.subr.mxu0 0.0
        %1389 = vmatpush1.msra.mxu0 0.0
        %1390 = vmatprep.subr.mxu0 0.0
        %1391 = vmatpush1.msra.mxu0 0.0
        %1392 = vmatprep.subr.mxu0 0.0
        %1393 = vmatpush1.msra.mxu0 0.0
        %1394 = vmatprep.subr.mxu0 0.0
        %1395 = vmatpush1.msra.mxu0 0.0
        %1396 = vmatprep.subr.mxu0 0.0
        %1397 = vmatpush1.msra.mxu0 0.0
        %1398 = vmatprep.subr.mxu0 0.0
        %1399 = vmatpush1.msra.mxu0 0.0
        %1400 = vmatprep.subr.mxu0 0.0
        %1401 = vmatpush1.msra.mxu0 0.0
        %1402 = vmatprep.subr.mxu0 0.0
        %1403 = vmatpush1.msra.mxu0 0.0
        %1404 = vmatprep.subr.mxu0 0.0
        %1405 = vmatpush1.msra.mxu0 0.0
        %1406 = vmatprep.subr.mxu0 0.0
        %1407 = vmatpush1.msra.mxu0 0.0
        %1408 = vmatprep.subr.mxu0 0.0
        %1409 = vmatpush1.msra.mxu0 0.0
        %1410 = vmatprep.subr.mxu0 0.0
        %1411 = vmatpush1.msra.mxu0 0.0
        %1412 = vmatprep.subr.mxu0 0.0
        %1413 = vmatpush1.msra.mxu0 0.0
        %1414 = vmatprep.subr.mxu0 0.0
        %1415 = vmatpush1.msra.mxu0 0.0
        %1416 = vmatprep.mubr.f32.mxu0 0.0
        %1417 = vmatmul.mubr.f32.gmra.mrb[0].mxu0 %v1341
        %v1418 = vpop.f32.mrb[0].mxu0
        %v1419 = vadd.f32 %v1322, %v1418
        %v1420 = vpop.f32.mrb[0].mxu0
        %1421 = vmatprep.mubr.f32.mxu0 0.0
        %1422 = vmatmul.mubr.f32.gmra.mrb[0].mxu0 %v1344
        %v1423 = vpop.f32.mrb[0].mxu0
        %v1424 = vadd.f32 %v1327, %v1423
        %v1425 = vpop.f32.mrb[0].mxu0
        %1426 = vmatprep.mubr.f32.mxu0 0.0
        %1427 = vmatmul.mubr.f32.gmra.mrb[0].mxu0 %v1347
        %v1428 = vpop.f32.mrb[0].mxu0
        %v1429 = vadd.f32 %v1332, %v1428
        %v1430 = vpop.f32.mrb[0].mxu0
        %1431 = vmatprep.mubr.f32.mxu0 0.0
        %1432 = vmatmul.mubr.f32.gmra.mrb[0].mxu0 %v1350
        %v1433 = vpop.f32.mrb[0].mxu0
        %v1434 = vadd.f32 %v1337, %v1433
        %v1435 = vpop.f32.mrb[0].mxu0
        %1436 = vdwg.mxu0
        %v1437 = vld [vmem:[%s4] sm:$0xff]
        %v1438 = vld [vmem:[%s4 + $0x8] sm:$0xff]
        %v1439 = vld [vmem:[%s4 + $0x10] sm:$0xff]
        %v1440 = vld [vmem:[%s4 + $0x18] sm:$0xff]
        %v1442 = vsel %vm1242, %v1437, 0
        %v1445 = vsel %vm1242, %v1438, 0
        %v1448 = vsel %vm1242, %v1439, 0
        %v1451 = vsel %vm1242, %v1440, 0
        %1453 = vmatprep.subr.mxu0 0.0
        %1454 = vmatpush1.msra.mxu0 %v589
        %1455 = vmatprep.subr.mxu0 0.0
        %1456 = vmatpush1.msra.mxu0 %v590
        %1457 = vmatprep.subr.mxu0 0.0
        %1458 = vmatpush1.msra.mxu0 %v591
        %1459 = vmatprep.subr.mxu0 0.0
        %1460 = vmatpush1.msra.mxu0 0.0
        %1461 = vmatprep.subr.mxu0 0.0
        %1462 = vmatpush1.msra.mxu0 0.0
        %1463 = vmatprep.subr.mxu0 0.0
        %1464 = vmatpush1.msra.mxu0 0.0
        %1465 = vmatprep.subr.mxu0 0.0
        %1466 = vmatpush1.msra.mxu0 0.0
        %1467 = vmatprep.subr.mxu0 0.0
        %1468 = vmatpush1.msra.mxu0 0.0
        %1469 = vmatprep.subr.mxu0 0.0
        %1470 = vmatpush1.msra.mxu0 0.0
        %1471 = vmatprep.subr.mxu0 0.0
        %1472 = vmatpush1.msra.mxu0 0.0
        %1473 = vmatprep.subr.mxu0 0.0
        %1474 = vmatpush1.msra.mxu0 0.0
        %1475 = vmatprep.subr.mxu0 0.0
        %1476 = vmatpush1.msra.mxu0 0.0
        %1477 = vmatprep.subr.mxu0 0.0
        %1478 = vmatpush1.msra.mxu0 0.0
        %1479 = vmatprep.subr.mxu0 0.0
        %1480 = vmatpush1.msra.mxu0 0.0
        %1481 = vmatprep.subr.mxu0 0.0
        %1482 = vmatpush1.msra.mxu0 0.0
        %1483 = vmatprep.subr.mxu0 0.0
        %1484 = vmatpush1.msra.mxu0 0.0
        %1485 = vmatprep.subr.mxu0 0.0
        %1486 = vmatpush1.msra.mxu0 0.0
        %1487 = vmatprep.subr.mxu0 0.0
        %1488 = vmatpush1.msra.mxu0 0.0
        %1489 = vmatprep.subr.mxu0 0.0
        %1490 = vmatpush1.msra.mxu0 0.0
        %1491 = vmatprep.subr.mxu0 0.0
        %1492 = vmatpush1.msra.mxu0 0.0
        %1493 = vmatprep.subr.mxu0 0.0
        %1494 = vmatpush1.msra.mxu0 0.0
        %1495 = vmatprep.subr.mxu0 0.0
        %1496 = vmatpush1.msra.mxu0 0.0
        %1497 = vmatprep.subr.mxu0 0.0
        %1498 = vmatpush1.msra.mxu0 0.0
        %1499 = vmatprep.subr.mxu0 0.0
        %1500 = vmatpush1.msra.mxu0 0.0
        %1501 = vmatprep.subr.mxu0 0.0
        %1502 = vmatpush1.msra.mxu0 0.0
        %1503 = vmatprep.subr.mxu0 0.0
        %1504 = vmatpush1.msra.mxu0 0.0
        %1505 = vmatprep.subr.mxu0 0.0
        %1506 = vmatpush1.msra.mxu0 0.0
        %1507 = vmatprep.subr.mxu0 0.0
        %1508 = vmatpush1.msra.mxu0 0.0
        %1509 = vmatprep.subr.mxu0 0.0
        %1510 = vmatpush1.msra.mxu0 0.0
        %1511 = vmatprep.subr.mxu0 0.0
        %1512 = vmatpush1.msra.mxu0 0.0
        %1513 = vmatprep.subr.mxu0 0.0
        %1514 = vmatpush1.msra.mxu0 0.0
        %1515 = vmatprep.subr.mxu0 0.0
        %1516 = vmatpush1.msra.mxu0 0.0
        %1517 = vmatprep.mubr.f32.mxu0 0.0
        %1518 = vmatmul.mubr.f32.gmra.mrb[0].mxu0 %v1442
        %v1519 = vpop.f32.mrb[0].mxu0
        %v1520 = vadd.f32 0.0, %v1519
        %v1521 = vpop.f32.mrb[0].mxu0
        %1522 = vmatprep.mubr.f32.mxu0 0.0
        %1523 = vmatmul.mubr.f32.gmra.mrb[0].mxu0 %v1445
        %v1524 = vpop.f32.mrb[0].mxu0
        %v1525 = vadd.f32 0.0, %v1524
        %v1526 = vpop.f32.mrb[0].mxu0
        %1527 = vmatprep.mubr.f32.mxu0 0.0
        %1528 = vmatmul.mubr.f32.gmra.mrb[0].mxu0 %v1448
        %v1529 = vpop.f32.mrb[0].mxu0
        %v1530 = vadd.f32 0.0, %v1529
        %v1531 = vpop.f32.mrb[0].mxu0
        %1532 = vmatprep.mubr.f32.mxu0 0.0
        %1533 = vmatmul.mubr.f32.gmra.mrb[0].mxu0 %v1451
        %v1534 = vpop.f32.mrb[0].mxu0
        %v1535 = vadd.f32 0.0, %v1534
        %v1536 = vpop.f32.mrb[0].mxu0
        %1537 = vdwg.mxu0
        %v1538 = vadd.f32 %v1419, %v1520
        %v1539 = vadd.f32 %v1424, %v1525
        %v1540 = vadd.f32 %v1429, %v1530
        %v1541 = vadd.f32 %v1434, %v1535
        %v1542 = vld [vmem:[%s5] sm:$0xff]
        %v1543 = vld [vmem:[%s5 + $0x8] sm:$0xff]
        %v1544 = vld [vmem:[%s5 + $0x10] sm:$0xff]
        %v1545 = vld [vmem:[%s5 + $0x18] sm:$0xff]
        %1547 = vset.pattern.permute.xlu0 0
        %1548 = vperm.xlu0 %1547, %v1542
        %v1549 = vpop.permute.xlu0 %1548
        %1552 = vset.pattern.permute.xlu0 0
        %1553 = vperm.xlu0 %1552, %v1543
        %v1554 = vpop.permute.xlu0 %1553
        %1557 = vset.pattern.permute.xlu0 0
        %1558 = vperm.xlu0 %1557, %v1544
        %v1559 = vpop.permute.xlu0 %1558
        %1562 = vset.pattern.permute.xlu0 0
        %1563 = vperm.xlu0 %1562, %v1545
        %v1564 = vpop.permute.xlu0 %1563
        %v1566 = vadd.f32 %v1538, %v1549
        %v1567 = vadd.f32 %v1539, %v1554
        %v1568 = vadd.f32 %v1540, %v1559
        %v1569 = vadd.f32 %v1541, %v1564
        %v1570 = vmax.f32 %v1566, 0.0
        %v1571 = vmax.f32 %v1567, 0.0
        %v1572 = vmax.f32 %v1568, 0.0
        %v1573 = vmax.f32 %v1569, 0.0
        %v1574 = vld [vmem:[%s6] sm:$0xff]
        %v1575 = vld [vmem:[%s6 + $0x8] sm:$0xff]
        %v1576 = vld [vmem:[%s6 + $0x10] sm:$0xff]
        %v1577 = vld [vmem:[%s6 + $0x18] sm:$0xff]
        %v1578 = vld [vmem:[%s7] sm:$0xff]
        %v1579 = vld [vmem:[%s7 + $0x8] sm:$0xff]
        %v1580 = vld [vmem:[%s7 + $0x10] sm:$0xff]
        %v1581 = vld [vmem:[%s7 + $0x18] sm:$0xff]
        %1583 = vset.pattern.permute.xlu0 0
        %1584 = vperm.xlu0 %1583, %v1578
        %v1585 = vpop.permute.xlu0 %1584
        %1588 = vset.pattern.permute.xlu0 0
        %1589 = vperm.xlu0 %1588, %v1579
        %v1590 = vpop.permute.xlu0 %1589
        %1593 = vset.pattern.permute.xlu0 0
        %1594 = vperm.xlu0 %1593, %v1580
        %v1595 = vpop.permute.xlu0 %1594
        %1598 = vset.pattern.permute.xlu0 0
        %1599 = vperm.xlu0 %1598, %v1581
        %v1600 = vpop.permute.xlu0 %1599
        %vm1602 = vcmask 261120
        %v1604 = vsel %vm1602, %v1574, 0
        %v1607 = vsel %vm1602, %v1575, 0
        %v1610 = vsel %vm1602, %v1576, 0
        %v1613 = vsel %vm1602, %v1577, 0
        %1615 = vmatprep.subr.mxu0 0.0
        %1616 = vmatpush1.msra.mxu0 %v1570
        %1617 = vmatprep.subr.mxu0 0.0
        %1618 = vmatpush1.msra.mxu0 %v1571
        %1619 = vmatprep.subr.mxu0 0.0
        %1620 = vmatpush1.msra.mxu0 %v1572
        %1621 = vmatprep.subr.mxu0 0.0
        %1622 = vmatpush1.msra.mxu0 %v1573
        %1623 = vmatprep.subr.mxu0 0.0
        %1624 = vmatpush1.msra.mxu0 0.0
        %1625 = vmatprep.subr.mxu0 0.0
        %1626 = vmatpush1.msra.mxu0 0.0
        %1627 = vmatprep.subr.mxu0 0.0
        %1628 = vmatpush1.msra.mxu0 0.0
        %1629 = vmatprep.subr.mxu0 0.0
        %1630 = vmatpush1.msra.mxu0 0.0
        %1631 = vmatprep.subr.mxu0 0.0
        %1632 = vmatpush1.msra.mxu0 0.0
        %1633 = vmatprep.subr.mxu0 0.0
        %1634 = vmatpush1.msra.mxu0 0.0
        %1635 = vmatprep.subr.mxu0 0.0
        %1636 = vmatpush1.msra.mxu0 0.0
        %1637 = vmatprep.subr.mxu0 0.0
        %1638 = vmatpush1.msra.mxu0 0.0
        %1639 = vmatprep.subr.mxu0 0.0
        %1640 = vmatpush1.msra.mxu0 0.0
        %1641 = vmatprep.subr.mxu0 0.0
        %1642 = vmatpush1.msra.mxu0 0.0
        %1643 = vmatprep.subr.mxu0 0.0
        %1644 = vmatpush1.msra.mxu0 0.0
        %1645 = vmatprep.subr.mxu0 0.0
        %1646 = vmatpush1.msra.mxu0 0.0
        %1647 = vmatprep.subr.mxu0 0.0
        %1648 = vmatpush1.msra.mxu0 0.0
        %1649 = vmatprep.subr.mxu0 0.0
        %1650 = vmatpush1.msra.mxu0 0.0
        %1651 = vmatprep.subr.mxu0 0.0
        %1652 = vmatpush1.msra.mxu0 0.0
        %1653 = vmatprep.subr.mxu0 0.0
        %1654 = vmatpush1.msra.mxu0 0.0
        %1655 = vmatprep.subr.mxu0 0.0
        %1656 = vmatpush1.msra.mxu0 0.0
        %1657 = vmatprep.subr.mxu0 0.0
        %1658 = vmatpush1.msra.mxu0 0.0
        %1659 = vmatprep.subr.mxu0 0.0
        %1660 = vmatpush1.msra.mxu0 0.0
        %1661 = vmatprep.subr.mxu0 0.0
        %1662 = vmatpush1.msra.mxu0 0.0
        %1663 = vmatprep.subr.mxu0 0.0
        %1664 = vmatpush1.msra.mxu0 0.0
        %1665 = vmatprep.subr.mxu0 0.0
        %1666 = vmatpush1.msra.mxu0 0.0
        %1667 = vmatprep.subr.mxu0 0.0
        %1668 = vmatpush1.msra.mxu0 0.0
        %1669 = vmatprep.subr.mxu0 0.0
        %1670 = vmatpush1.msra.mxu0 0.0
        %1671 = vmatprep.subr.mxu0 0.0
        %1672 = vmatpush1.msra.mxu0 0.0
        %1673 = vmatprep.subr.mxu0 0.0
        %1674 = vmatpush1.msra.mxu0 0.0
        %1675 = vmatprep.subr.mxu0 0.0
        %1676 = vmatpush1.msra.mxu0 0.0
        %1677 = vmatprep.subr.mxu0 0.0
        %1678 = vmatpush1.msra.mxu0 0.0
        %1679 = vmatprep.mubr.f32.mxu0 0.0
        %1680 = vmatmul.mubr.f32.gmra.mrb[0].mxu0 %v1604
        %v1681 = vpop.f32.mrb[0].mxu0
        %v1682 = vadd.f32 %v1585, %v1681
        %v1683 = vpop.f32.mrb[0].mxu0
        %1684 = vmatprep.mubr.f32.mxu0 0.0
        %1685 = vmatmul.mubr.f32.gmra.mrb[0].mxu0 %v1607
        %v1686 = vpop.f32.mrb[0].mxu0
        %v1687 = vadd.f32 %v1590, %v1686
        %v1688 = vpop.f32.mrb[0].mxu0
        %1689 = vmatprep.mubr.f32.mxu0 0.0
        %1690 = vmatmul.mubr.f32.gmra.mrb[0].mxu0 %v1610
        %v1691 = vpop.f32.mrb[0].mxu0
        %v1692 = vadd.f32 %v1595, %v1691
        %v1693 = vpop.f32.mrb[0].mxu0
        %1694 = vmatprep.mubr.f32.mxu0 0.0
        %1695 = vmatmul.mubr.f32.gmra.mrb[0].mxu0 %v1613
        %v1696 = vpop.f32.mrb[0].mxu0
        %v1697 = vadd.f32 %v1600, %v1696
        %v1698 = vpop.f32.mrb[0].mxu0
        %1699 = vdwg.mxu0
        %v1700 = vmax.f32 %v1682, 0.0
        %v1701 = vmax.f32 %v1687, 0.0
        %v1702 = vmax.f32 %v1692, 0.0
        %v1703 = vmax.f32 %v1697, 0.0
        %v1704 = vld [vmem:[%s8] sm:$0xff]
        %v1705 = vld [vmem:[%s8 + $0x8] sm:$0xff]
        %v1706 = vld [vmem:[%s8 + $0x10] sm:$0xff]
        %v1707 = vld [vmem:[%s8 + $0x18] sm:$0xff]
        %v1708 = vld [vmem:[%s9] sm:$0xff]
        %v1709 = vld [vmem:[%s9 + $0x8] sm:$0xff]
        %v1710 = vld [vmem:[%s9 + $0x10] sm:$0xff]
        %v1711 = vld [vmem:[%s9 + $0x18] sm:$0xff]
        %v1713 = vsel %vm1242, %v1708, 0
        %v1716 = vsel %vm1242, %v1709, 0
        %v1719 = vsel %vm1242, %v1710, 0
        %v1722 = vsel %vm1242, %v1711, 0
        %1724 = vmatprep.subr.mxu0 0.0
        %1725 = vmatpush1.msra.mxu0 %v716
        %1726 = vmatprep.subr.mxu0 0.0
        %1727 = vmatpush1.msra.mxu0 %v820
        %1728 = vmatprep.subr.mxu0 0.0
        %1729 = vmatpush1.msra.mxu0 %v924
        %1730 = vmatprep.subr.mxu0 0.0
        %1731 = vmatpush1.msra.mxu0 0.0
        %1732 = vmatprep.subr.mxu0 0.0
        %1733 = vmatpush1.msra.mxu0 0.0
        %1734 = vmatprep.subr.mxu0 0.0
        %1735 = vmatpush1.msra.mxu0 0.0
        %1736 = vmatprep.subr.mxu0 0.0
        %1737 = vmatpush1.msra.mxu0 0.0
        %1738 = vmatprep.subr.mxu0 0.0
        %1739 = vmatpush1.msra.mxu0 0.0
        %1740 = vmatprep.subr.mxu0 0.0
        %1741 = vmatpush1.msra.mxu0 0.0
        %1742 = vmatprep.subr.mxu0 0.0
        %1743 = vmatpush1.msra.mxu0 0.0
        %1744 = vmatprep.subr.mxu0 0.0
        %1745 = vmatpush1.msra.mxu0 0.0
        %1746 = vmatprep.subr.mxu0 0.0
        %1747 = vmatpush1.msra.mxu0 0.0
        %1748 = vmatprep.subr.mxu0 0.0
        %1749 = vmatpush1.msra.mxu0 0.0
        %1750 = vmatprep.subr.mxu0 0.0
        %1751 = vmatpush1.msra.mxu0 0.0
        %1752 = vmatprep.subr.mxu0 0.0
        %1753 = vmatpush1.msra.mxu0 0.0
        %1754 = vmatprep.subr.mxu0 0.0
        %1755 = vmatpush1.msra.mxu0 0.0
        %1756 = vmatprep.subr.mxu0 0.0
        %1757 = vmatpush1.msra.mxu0 0.0
        %1758 = vmatprep.subr.mxu0 0.0
        %1759 = vmatpush1.msra.mxu0 0.0
        %1760 = vmatprep.subr.mxu0 0.0
        %1761 = vmatpush1.msra.mxu0 0.0
        %1762 = vmatprep.subr.mxu0 0.0
        %1763 = vmatpush1.msra.mxu0 0.0
        %1764 = vmatprep.subr.mxu0 0.0
        %1765 = vmatpush1.msra.mxu0 0.0
        %1766 = vmatprep.subr.mxu0 0.0
        %1767 = vmatpush1.msra.mxu0 0.0
        %1768 = vmatprep.subr.mxu0 0.0
        %1769 = vmatpush1.msra.mxu0 0.0
        %1770 = vmatprep.subr.mxu0 0.0
        %1771 = vmatpush1.msra.mxu0 0.0
        %1772 = vmatprep.subr.mxu0 0.0
        %1773 = vmatpush1.msra.mxu0 0.0
        %1774 = vmatprep.subr.mxu0 0.0
        %1775 = vmatpush1.msra.mxu0 0.0
        %1776 = vmatprep.subr.mxu0 0.0
        %1777 = vmatpush1.msra.mxu0 0.0
        %1778 = vmatprep.subr.mxu0 0.0
        %1779 = vmatpush1.msra.mxu0 0.0
        %1780 = vmatprep.subr.mxu0 0.0
        %1781 = vmatpush1.msra.mxu0 0.0
        %1782 = vmatprep.subr.mxu0 0.0
        %1783 = vmatpush1.msra.mxu0 0.0
        %1784 = vmatprep.subr.mxu0 0.0
        %1785 = vmatpush1.msra.mxu0 0.0
        %1786 = vmatprep.subr.mxu0 0.0
        %1787 = vmatpush1.msra.mxu0 0.0
        %1788 = vmatprep.mubr.f32.mxu0 0.0
        %1789 = vmatmul.mubr.f32.gmra.mrb[0].mxu0 %v1713
        %v1790 = vpop.f32.mrb[0].mxu0
        %v1791 = vadd.f32 0.0, %v1790
        %v1792 = vpop.f32.mrb[0].mxu0
        %1793 = vmatprep.mubr.f32.mxu0 0.0
        %1794 = vmatmul.mubr.f32.gmra.mrb[0].mxu0 %v1716
        %v1795 = vpop.f32.mrb[0].mxu0
        %v1796 = vadd.f32 0.0, %v1795
        %v1797 = vpop.f32.mrb[0].mxu0
        %1798 = vmatprep.mubr.f32.mxu0 0.0
        %1799 = vmatmul.mubr.f32.gmra.mrb[0].mxu0 %v1719
        %v1800 = vpop.f32.mrb[0].mxu0
        %v1801 = vadd.f32 0.0, %v1800
        %v1802 = vpop.f32.mrb[0].mxu0
        %1803 = vmatprep.mubr.f32.mxu0 0.0
        %1804 = vmatmul.mubr.f32.gmra.mrb[0].mxu0 %v1722
        %v1805 = vpop.f32.mrb[0].mxu0
        %v1806 = vadd.f32 0.0, %v1805
        %v1807 = vpop.f32.mrb[0].mxu0
        %1808 = vdwg.mxu0
        %v1810 = vsel %vm1602, %v1704, 0
        %v1813 = vsel %vm1602, %v1705, 0
        %v1816 = vsel %vm1602, %v1706, 0
        %v1819 = vsel %vm1602, %v1707, 0
        %1821 = vmatprep.subr.mxu0 0.0
        %1822 = vmatpush1.msra.mxu0 %v1700
        %1823 = vmatprep.subr.mxu0 0.0
        %1824 = vmatpush1.msra.mxu0 %v1701
        %1825 = vmatprep.subr.mxu0 0.0
        %1826 = vmatpush1.msra.mxu0 %v1702
        %1827 = vmatprep.subr.mxu0 0.0
        %1828 = vmatpush1.msra.mxu0 %v1703
        %1829 = vmatprep.subr.mxu0 0.0
        %1830 = vmatpush1.msra.mxu0 0.0
        %1831 = vmatprep.subr.mxu0 0.0
        %1832 = vmatpush1.msra.mxu0 0.0
        %1833 = vmatprep.subr.mxu0 0.0
        %1834 = vmatpush1.msra.mxu0 0.0
        %1835 = vmatprep.subr.mxu0 0.0
        %1836 = vmatpush1.msra.mxu0 0.0
        %1837 = vmatprep.subr.mxu0 0.0
        %1838 = vmatpush1.msra.mxu0 0.0
        %1839 = vmatprep.subr.mxu0 0.0
        %1840 = vmatpush1.msra.mxu0 0.0
        %1841 = vmatprep.subr.mxu0 0.0
        %1842 = vmatpush1.msra.mxu0 0.0
        %1843 = vmatprep.subr.mxu0 0.0
        %1844 = vmatpush1.msra.mxu0 0.0
        %1845 = vmatprep.subr.mxu0 0.0
        %1846 = vmatpush1.msra.mxu0 0.0
        %1847 = vmatprep.subr.mxu0 0.0
        %1848 = vmatpush1.msra.mxu0 0.0
        %1849 = vmatprep.subr.mxu0 0.0
        %1850 = vmatpush1.msra.mxu0 0.0
        %1851 = vmatprep.subr.mxu0 0.0
        %1852 = vmatpush1.msra.mxu0 0.0
        %1853 = vmatprep.subr.mxu0 0.0
        %1854 = vmatpush1.msra.mxu0 0.0
        %1855 = vmatprep.subr.mxu0 0.0
        %1856 = vmatpush1.msra.mxu0 0.0
        %1857 = vmatprep.subr.mxu0 0.0
        %1858 = vmatpush1.msra.mxu0 0.0
        %1859 = vmatprep.subr.mxu0 0.0
        %1860 = vmatpush1.msra.mxu0 0.0
        %1861 = vmatprep.subr.mxu0 0.0
        %1862 = vmatpush1.msra.mxu0 0.0
        %1863 = vmatprep.subr.mxu0 0.0
        %1864 = vmatpush1.msra.mxu0 0.0
        %1865 = vmatprep.subr.mxu0 0.0
        %1866 = vmatpush1.msra.mxu0 0.0
        %1867 = vmatprep.subr.mxu0 0.0
        %1868 = vmatpush1.msra.mxu0 0.0
        %1869 = vmatprep.subr.mxu0 0.0
        %1870 = vmatpush1.msra.mxu0 0.0
        %1871 = vmatprep.subr.mxu0 0.0
        %1872 = vmatpush1.msra.mxu0 0.0
        %1873 = vmatprep.subr.mxu0 0.0
        %1874 = vmatpush1.msra.mxu0 0.0
        %1875 = vmatprep.subr.mxu0 0.0
        %1876 = vmatpush1.msra.mxu0 0.0
        %1877 = vmatprep.subr.mxu0 0.0
        %1878 = vmatpush1.msra.mxu0 0.0
        %1879 = vmatprep.subr.mxu0 0.0
        %1880 = vmatpush1.msra.mxu0 0.0
        %1881 = vmatprep.subr.mxu0 0.0
        %1882 = vmatpush1.msra.mxu0 0.0
        %1883 = vmatprep.subr.mxu0 0.0
        %1884 = vmatpush1.msra.mxu0 0.0
        %1885 = vmatprep.mubr.f32.mxu0 0.0
        %1886 = vmatmul.mubr.f32.gmra.mrb[0].mxu0 %v1810
        %v1887 = vpop.f32.mrb[0].mxu0
        %v1888 = vadd.f32 %v1791, %v1887
        %v1889 = vpop.f32.mrb[0].mxu0
        %1890 = vmatprep.mubr.f32.mxu0 0.0
        %1891 = vmatmul.mubr.f32.gmra.mrb[0].mxu0 %v1813
        %v1892 = vpop.f32.mrb[0].mxu0
        %v1893 = vadd.f32 %v1796, %v1892
        %v1894 = vpop.f32.mrb[0].mxu0
        %1895 = vmatprep.mubr.f32.mxu0 0.0
        %1896 = vmatmul.mubr.f32.gmra.mrb[0].mxu0 %v1816
        %v1897 = vpop.f32.mrb[0].mxu0
        %v1898 = vadd.f32 %v1801, %v1897
        %v1899 = vpop.f32.mrb[0].mxu0
        %1900 = vmatprep.mubr.f32.mxu0 0.0
        %1901 = vmatmul.mubr.f32.gmra.mrb[0].mxu0 %v1819
        %v1902 = vpop.f32.mrb[0].mxu0
        %v1903 = vadd.f32 %v1806, %v1902
        %v1904 = vpop.f32.mrb[0].mxu0
        %1905 = vdwg.mxu0
        %v1906 = vld [vmem:[%s10] sm:$0xff]
        %v1907 = vld [vmem:[%s10 + $0x8] sm:$0xff]
        %v1908 = vld [vmem:[%s10 + $0x10] sm:$0xff]
        %v1909 = vld [vmem:[%s10 + $0x18] sm:$0xff]
        %v1911 = vsel %vm1242, %v1906, 0
        %v1914 = vsel %vm1242, %v1907, 0
        %v1917 = vsel %vm1242, %v1908, 0
        %v1920 = vsel %vm1242, %v1909, 0
        %1922 = vmatprep.subr.mxu0 0.0
        %1923 = vmatpush1.msra.mxu0 %v1027
        %1924 = vmatprep.subr.mxu0 0.0
        %1925 = vmatpush1.msra.mxu0 %v1130
        %1926 = vmatprep.subr.mxu0 0.0
        %1927 = vmatpush1.msra.mxu0 %v1233
        %1928 = vmatprep.subr.mxu0 0.0
        %1929 = vmatpush1.msra.mxu0 0.0
        %1930 = vmatprep.subr.mxu0 0.0
        %1931 = vmatpush1.msra.mxu0 0.0
        %1932 = vmatprep.subr.mxu0 0.0
        %1933 = vmatpush1.msra.mxu0 0.0
        %1934 = vmatprep.subr.mxu0 0.0
        %1935 = vmatpush1.msra.mxu0 0.0
        %1936 = vmatprep.subr.mxu0 0.0
        %1937 = vmatpush1.msra.mxu0 0.0
        %1938 = vmatprep.subr.mxu0 0.0
        %1939 = vmatpush1.msra.mxu0 0.0
        %1940 = vmatprep.subr.mxu0 0.0
        %1941 = vmatpush1.msra.mxu0 0.0
        %1942 = vmatprep.subr.mxu0 0.0
        %1943 = vmatpush1.msra.mxu0 0.0
        %1944 = vmatprep.subr.mxu0 0.0
        %1945 = vmatpush1.msra.mxu0 0.0
        %1946 = vmatprep.subr.mxu0 0.0
        %1947 = vmatpush1.msra.mxu0 0.0
        %1948 = vmatprep.subr.mxu0 0.0
        %1949 = vmatpush1.msra.mxu0 0.0
        %1950 = vmatprep.subr.mxu0 0.0
        %1951 = vmatpush1.msra.mxu0 0.0
        %1952 = vmatprep.subr.mxu0 0.0
        %1953 = vmatpush1.msra.mxu0 0.0
        %1954 = vmatprep.subr.mxu0 0.0
        %1955 = vmatpush1.msra.mxu0 0.0
        %1956 = vmatprep.subr.mxu0 0.0
        %1957 = vmatpush1.msra.mxu0 0.0
        %1958 = vmatprep.subr.mxu0 0.0
        %1959 = vmatpush1.msra.mxu0 0.0
        %1960 = vmatprep.subr.mxu0 0.0
        %1961 = vmatpush1.msra.mxu0 0.0
        %1962 = vmatprep.subr.mxu0 0.0
        %1963 = vmatpush1.msra.mxu0 0.0
        %1964 = vmatprep.subr.mxu0 0.0
        %1965 = vmatpush1.msra.mxu0 0.0
        %1966 = vmatprep.subr.mxu0 0.0
        %1967 = vmatpush1.msra.mxu0 0.0
        %1968 = vmatprep.subr.mxu0 0.0
        %1969 = vmatpush1.msra.mxu0 0.0
        %1970 = vmatprep.subr.mxu0 0.0
        %1971 = vmatpush1.msra.mxu0 0.0
        %1972 = vmatprep.subr.mxu0 0.0
        %1973 = vmatpush1.msra.mxu0 0.0
        %1974 = vmatprep.subr.mxu0 0.0
        %1975 = vmatpush1.msra.mxu0 0.0
        %1976 = vmatprep.subr.mxu0 0.0
        %1977 = vmatpush1.msra.mxu0 0.0
        %1978 = vmatprep.subr.mxu0 0.0
        %1979 = vmatpush1.msra.mxu0 0.0
        %1980 = vmatprep.subr.mxu0 0.0
        %1981 = vmatpush1.msra.mxu0 0.0
        %1982 = vmatprep.subr.mxu0 0.0
        %1983 = vmatpush1.msra.mxu0 0.0
        %1984 = vmatprep.subr.mxu0 0.0
        %1985 = vmatpush1.msra.mxu0 0.0
        %1986 = vmatprep.mubr.f32.mxu0 0.0
        %1987 = vmatmul.mubr.f32.gmra.mrb[0].mxu0 %v1911
        %v1988 = vpop.f32.mrb[0].mxu0
        %v1989 = vadd.f32 0.0, %v1988
        %v1990 = vpop.f32.mrb[0].mxu0
        %1991 = vmatprep.mubr.f32.mxu0 0.0
        %1992 = vmatmul.mubr.f32.gmra.mrb[0].mxu0 %v1914
        %v1993 = vpop.f32.mrb[0].mxu0
        %v1994 = vadd.f32 0.0, %v1993
        %v1995 = vpop.f32.mrb[0].mxu0
        %1996 = vmatprep.mubr.f32.mxu0 0.0
        %1997 = vmatmul.mubr.f32.gmra.mrb[0].mxu0 %v1917
        %v1998 = vpop.f32.mrb[0].mxu0
        %v1999 = vadd.f32 0.0, %v1998
        %v2000 = vpop.f32.mrb[0].mxu0
        %2001 = vmatprep.mubr.f32.mxu0 0.0
        %2002 = vmatmul.mubr.f32.gmra.mrb[0].mxu0 %v1920
        %v2003 = vpop.f32.mrb[0].mxu0
        %v2004 = vadd.f32 0.0, %v2003
        %v2005 = vpop.f32.mrb[0].mxu0
        %2006 = vdwg.mxu0
        %v2007 = vadd.f32 %v1888, %v1989
        %v2008 = vadd.f32 %v1893, %v1994
        %v2009 = vadd.f32 %v1898, %v1999
        %v2010 = vadd.f32 %v1903, %v2004
        %v2011 = vld [vmem:[%s11] sm:$0xff]
        %v2012 = vld [vmem:[%s11 + $0x8] sm:$0xff]
        %v2013 = vld [vmem:[%s11 + $0x10] sm:$0xff]
        %v2014 = vld [vmem:[%s11 + $0x18] sm:$0xff]
        %v2016 = vsel %vm1242, %v2011, 0
        %v2019 = vsel %vm1242, %v2012, 0
        %v2022 = vsel %vm1242, %v2013, 0
        %v2025 = vsel %vm1242, %v2014, 0
        %2027 = vmatprep.subr.mxu0 0.0
        %2028 = vmatpush1.msra.mxu0 %v589
        %2029 = vmatprep.subr.mxu0 0.0
        %2030 = vmatpush1.msra.mxu0 %v590
        %2031 = vmatprep.subr.mxu0 0.0
        %2032 = vmatpush1.msra.mxu0 %v591
        %2033 = vmatprep.subr.mxu0 0.0
        %2034 = vmatpush1.msra.mxu0 0.0
        %2035 = vmatprep.subr.mxu0 0.0
        %2036 = vmatpush1.msra.mxu0 0.0
        %2037 = vmatprep.subr.mxu0 0.0
        %2038 = vmatpush1.msra.mxu0 0.0
        %2039 = vmatprep.subr.mxu0 0.0
        %2040 = vmatpush1.msra.mxu0 0.0
        %2041 = vmatprep.subr.mxu0 0.0
        %2042 = vmatpush1.msra.mxu0 0.0
        %2043 = vmatprep.subr.mxu0 0.0
        %2044 = vmatpush1.msra.mxu0 0.0
        %2045 = vmatprep.subr.mxu0 0.0
        %2046 = vmatpush1.msra.mxu0 0.0
        %2047 = vmatprep.subr.mxu0 0.0
        %2048 = vmatpush1.msra.mxu0 0.0
        %2049 = vmatprep.subr.mxu0 0.0
        %2050 = vmatpush1.msra.mxu0 0.0
        %2051 = vmatprep.subr.mxu0 0.0
        %2052 = vmatpush1.msra.mxu0 0.0
        %2053 = vmatprep.subr.mxu0 0.0
        %2054 = vmatpush1.msra.mxu0 0.0
        %2055 = vmatprep.subr.mxu0 0.0
        %2056 = vmatpush1.msra.mxu0 0.0
        %2057 = vmatprep.subr.mxu0 0.0
        %2058 = vmatpush1.msra.mxu0 0.0
        %2059 = vmatprep.subr.mxu0 0.0
        %2060 = vmatpush1.msra.mxu0 0.0
        %2061 = vmatprep.subr.mxu0 0.0
        %2062 = vmatpush1.msra.mxu0 0.0
        %2063 = vmatprep.subr.mxu0 0.0
        %2064 = vmatpush1.msra.mxu0 0.0
        %2065 = vmatprep.subr.mxu0 0.0
        %2066 = vmatpush1.msra.mxu0 0.0
        %2067 = vmatprep.subr.mxu0 0.0
        %2068 = vmatpush1.msra.mxu0 0.0
        %2069 = vmatprep.subr.mxu0 0.0
        %2070 = vmatpush1.msra.mxu0 0.0
        %2071 = vmatprep.subr.mxu0 0.0
        %2072 = vmatpush1.msra.mxu0 0.0
        %2073 = vmatprep.subr.mxu0 0.0
        %2074 = vmatpush1.msra.mxu0 0.0
        %2075 = vmatprep.subr.mxu0 0.0
        %2076 = vmatpush1.msra.mxu0 0.0
        %2077 = vmatprep.subr.mxu0 0.0
        %2078 = vmatpush1.msra.mxu0 0.0
        %2079 = vmatprep.subr.mxu0 0.0
        %2080 = vmatpush1.msra.mxu0 0.0
        %2081 = vmatprep.subr.mxu0 0.0
        %2082 = vmatpush1.msra.mxu0 0.0
        %2083 = vmatprep.subr.mxu0 0.0
        %2084 = vmatpush1.msra.mxu0 0.0
        %2085 = vmatprep.subr.mxu0 0.0
        %2086 = vmatpush1.msra.mxu0 0.0
        %2087 = vmatprep.subr.mxu0 0.0
        %2088 = vmatpush1.msra.mxu0 0.0
        %2089 = vmatprep.subr.mxu0 0.0
        %2090 = vmatpush1.msra.mxu0 0.0
        %2091 = vmatprep.mubr.f32.mxu0 0.0
        %2092 = vmatmul.mubr.f32.gmra.mrb[0].mxu0 %v2016
        %v2093 = vpop.f32.mrb[0].mxu0
        %v2094 = vadd.f32 0.0, %v2093
        %v2095 = vpop.f32.mrb[0].mxu0
        %2096 = vmatprep.mubr.f32.mxu0 0.0
        %2097 = vmatmul.mubr.f32.gmra.mrb[0].mxu0 %v2019
        %v2098 = vpop.f32.mrb[0].mxu0
        %v2099 = vadd.f32 0.0, %v2098
        %v2100 = vpop.f32.mrb[0].mxu0
        %2101 = vmatprep.mubr.f32.mxu0 0.0
        %2102 = vmatmul.mubr.f32.gmra.mrb[0].mxu0 %v2022
        %v2103 = vpop.f32.mrb[0].mxu0
        %v2104 = vadd.f32 0.0, %v2103
        %v2105 = vpop.f32.mrb[0].mxu0
        %2106 = vmatprep.mubr.f32.mxu0 0.0
        %2107 = vmatmul.mubr.f32.gmra.mrb[0].mxu0 %v2025
        %v2108 = vpop.f32.mrb[0].mxu0
        %v2109 = vadd.f32 0.0, %v2108
        %v2110 = vpop.f32.mrb[0].mxu0
        %2111 = vdwg.mxu0
        %v2112 = vadd.f32 %v2007, %v2094
        %v2113 = vadd.f32 %v2008, %v2099
        %v2114 = vadd.f32 %v2009, %v2104
        %v2115 = vadd.f32 %v2010, %v2109
        %v2116 = vld [vmem:[%s12] sm:$0xff]
        %v2117 = vld [vmem:[%s12 + $0x8] sm:$0xff]
        %v2118 = vld [vmem:[%s12 + $0x10] sm:$0xff]
        %v2119 = vld [vmem:[%s12 + $0x18] sm:$0xff]
        %2121 = vset.pattern.permute.xlu0 0
        %2122 = vperm.xlu0 %2121, %v2116
        %v2123 = vpop.permute.xlu0 %2122
        %2126 = vset.pattern.permute.xlu0 0
        %2127 = vperm.xlu0 %2126, %v2117
        %v2128 = vpop.permute.xlu0 %2127
        %2131 = vset.pattern.permute.xlu0 0
        %2132 = vperm.xlu0 %2131, %v2118
        %v2133 = vpop.permute.xlu0 %2132
        %2136 = vset.pattern.permute.xlu0 0
        %2137 = vperm.xlu0 %2136, %v2119
        %v2138 = vpop.permute.xlu0 %2137
        %v2140 = vadd.f32 %v2112, %v2123
        %v2141 = vadd.f32 %v2113, %v2128
        %v2142 = vadd.f32 %v2114, %v2133
        %v2143 = vadd.f32 %v2115, %v2138
        %v2144 = vmax.f32 %v2140, 0.0
        %v2145 = vmax.f32 %v2141, 0.0
        %v2146 = vmax.f32 %v2142, 0.0
        %v2147 = vmax.f32 %v2143, 0.0
        %v2148 = vld [vmem:[%s13] sm:$0xff]
        %v2149 = vld [vmem:[%s13 + $0x8] sm:$0xff]
        %v2150 = vld [vmem:[%s13 + $0x10] sm:$0xff]
        %v2151 = vld [vmem:[%s13 + $0x18] sm:$0xff]
        %v2152 = vld [vmem:[%s14] sm:$0xff]
        %v2153 = vld [vmem:[%s14 + $0x8] sm:$0xff]
        %v2154 = vld [vmem:[%s14 + $0x10] sm:$0xff]
        %v2155 = vld [vmem:[%s14 + $0x18] sm:$0xff]
        %2157 = vset.pattern.permute.xlu0 0
        %2158 = vperm.xlu0 %2157, %v2152
        %v2159 = vpop.permute.xlu0 %2158
        %2162 = vset.pattern.permute.xlu0 0
        %2163 = vperm.xlu0 %2162, %v2153
        %v2164 = vpop.permute.xlu0 %2163
        %2167 = vset.pattern.permute.xlu0 0
        %2168 = vperm.xlu0 %2167, %v2154
        %v2169 = vpop.permute.xlu0 %2168
        %2172 = vset.pattern.permute.xlu0 0
        %2173 = vperm.xlu0 %2172, %v2155
        %v2174 = vpop.permute.xlu0 %2173
        %v2177 = vsel %vm1602, %v2148, 0
        %v2180 = vsel %vm1602, %v2149, 0
        %v2183 = vsel %vm1602, %v2150, 0
        %v2186 = vsel %vm1602, %v2151, 0
        %2188 = vmatprep.subr.mxu0 0.0
        %2189 = vmatpush1.msra.mxu0 %v2144
        %2190 = vmatprep.subr.mxu0 0.0
        %2191 = vmatpush1.msra.mxu0 %v2145
        %2192 = vmatprep.subr.mxu0 0.0
        %2193 = vmatpush1.msra.mxu0 %v2146
        %2194 = vmatprep.subr.mxu0 0.0
        %2195 = vmatpush1.msra.mxu0 %v2147
        %2196 = vmatprep.subr.mxu0 0.0
        %2197 = vmatpush1.msra.mxu0 0.0
        %2198 = vmatprep.subr.mxu0 0.0
        %2199 = vmatpush1.msra.mxu0 0.0
        %2200 = vmatprep.subr.mxu0 0.0
        %2201 = vmatpush1.msra.mxu0 0.0
        %2202 = vmatprep.subr.mxu0 0.0
        %2203 = vmatpush1.msra.mxu0 0.0
        %2204 = vmatprep.subr.mxu0 0.0
        %2205 = vmatpush1.msra.mxu0 0.0
        %2206 = vmatprep.subr.mxu0 0.0
        %2207 = vmatpush1.msra.mxu0 0.0
        %2208 = vmatprep.subr.mxu0 0.0
        %2209 = vmatpush1.msra.mxu0 0.0
        %2210 = vmatprep.subr.mxu0 0.0
        %2211 = vmatpush1.msra.mxu0 0.0
        %2212 = vmatprep.subr.mxu0 0.0
        %2213 = vmatpush1.msra.mxu0 0.0
        %2214 = vmatprep.subr.mxu0 0.0
        %2215 = vmatpush1.msra.mxu0 0.0
        %2216 = vmatprep.subr.mxu0 0.0
        %2217 = vmatpush1.msra.mxu0 0.0
        %2218 = vmatprep.subr.mxu0 0.0
        %2219 = vmatpush1.msra.mxu0 0.0
        %2220 = vmatprep.subr.mxu0 0.0
        %2221 = vmatpush1.msra.mxu0 0.0
        %2222 = vmatprep.subr.mxu0 0.0
        %2223 = vmatpush1.msra.mxu0 0.0
        %2224 = vmatprep.subr.mxu0 0.0
        %2225 = vmatpush1.msra.mxu0 0.0
        %2226 = vmatprep.subr.mxu0 0.0
        %2227 = vmatpush1.msra.mxu0 0.0
        %2228 = vmatprep.subr.mxu0 0.0
        %2229 = vmatpush1.msra.mxu0 0.0
        %2230 = vmatprep.subr.mxu0 0.0
        %2231 = vmatpush1.msra.mxu0 0.0
        %2232 = vmatprep.subr.mxu0 0.0
        %2233 = vmatpush1.msra.mxu0 0.0
        %2234 = vmatprep.subr.mxu0 0.0
        %2235 = vmatpush1.msra.mxu0 0.0
        %2236 = vmatprep.subr.mxu0 0.0
        %2237 = vmatpush1.msra.mxu0 0.0
        %2238 = vmatprep.subr.mxu0 0.0
        %2239 = vmatpush1.msra.mxu0 0.0
        %2240 = vmatprep.subr.mxu0 0.0
        %2241 = vmatpush1.msra.mxu0 0.0
        %2242 = vmatprep.subr.mxu0 0.0
        %2243 = vmatpush1.msra.mxu0 0.0
        %2244 = vmatprep.subr.mxu0 0.0
        %2245 = vmatpush1.msra.mxu0 0.0
        %2246 = vmatprep.subr.mxu0 0.0
        %2247 = vmatpush1.msra.mxu0 0.0
        %2248 = vmatprep.subr.mxu0 0.0
        %2249 = vmatpush1.msra.mxu0 0.0
        %2250 = vmatprep.subr.mxu0 0.0
        %2251 = vmatpush1.msra.mxu0 0.0
        %2252 = vmatprep.mubr.f32.mxu0 0.0
        %2253 = vmatmul.mubr.f32.gmra.mrb[0].mxu0 %v2177
        %v2254 = vpop.f32.mrb[0].mxu0
        %v2255 = vadd.f32 %v2159, %v2254
        %v2256 = vpop.f32.mrb[0].mxu0
        %2257 = vmatprep.mubr.f32.mxu0 0.0
        %2258 = vmatmul.mubr.f32.gmra.mrb[0].mxu0 %v2180
        %v2259 = vpop.f32.mrb[0].mxu0
        %v2260 = vadd.f32 %v2164, %v2259
        %v2261 = vpop.f32.mrb[0].mxu0
        %2262 = vmatprep.mubr.f32.mxu0 0.0
        %2263 = vmatmul.mubr.f32.gmra.mrb[0].mxu0 %v2183
        %v2264 = vpop.f32.mrb[0].mxu0
        %v2265 = vadd.f32 %v2169, %v2264
        %v2266 = vpop.f32.mrb[0].mxu0
        %2267 = vmatprep.mubr.f32.mxu0 0.0
        %2268 = vmatmul.mubr.f32.gmra.mrb[0].mxu0 %v2186
        %v2269 = vpop.f32.mrb[0].mxu0
        %v2270 = vadd.f32 %v2174, %v2269
        %v2271 = vpop.f32.mrb[0].mxu0
        %2272 = vdwg.mxu0
        %v2273 = vmax.f32 %v2255, 0.0
        %v2274 = vmax.f32 %v2260, 0.0
        %v2275 = vmax.f32 %v2265, 0.0
        %v2276 = vmax.f32 %v2270, 0.0
        %v2277 = vld [vmem:[%s15] sm:$0xff]
        %v2278 = vld [vmem:[%s16] sm:$0xff]
        %2280 = vset.pattern.permute.xlu0 0
        %2281 = vperm.xlu0 %2280, %v2278
        %v2282 = vpop.permute.xlu0 %2281
        %v2285 = vsel %vm1602, %v2277, 0
        %2287 = vmatprep.subr.mxu0 0.0
        %2288 = vmatpush1.msra.mxu0 %v2273
        %2289 = vmatprep.subr.mxu0 0.0
        %2290 = vmatpush1.msra.mxu0 %v2274
        %2291 = vmatprep.subr.mxu0 0.0
        %2292 = vmatpush1.msra.mxu0 %v2275
        %2293 = vmatprep.subr.mxu0 0.0
        %2294 = vmatpush1.msra.mxu0 %v2276
        %2295 = vmatprep.subr.mxu0 0.0
        %2296 = vmatpush1.msra.mxu0 0.0
        %2297 = vmatprep.subr.mxu0 0.0
        %2298 = vmatpush1.msra.mxu0 0.0
        %2299 = vmatprep.subr.mxu0 0.0
        %2300 = vmatpush1.msra.mxu0 0.0
        %2301 = vmatprep.subr.mxu0 0.0
        %2302 = vmatpush1.msra.mxu0 0.0
        %2303 = vmatprep.subr.mxu0 0.0
        %2304 = vmatpush1.msra.mxu0 0.0
        %2305 = vmatprep.subr.mxu0 0.0
        %2306 = vmatpush1.msra.mxu0 0.0
        %2307 = vmatprep.subr.mxu0 0.0
        %2308 = vmatpush1.msra.mxu0 0.0
        %2309 = vmatprep.subr.mxu0 0.0
        %2310 = vmatpush1.msra.mxu0 0.0
        %2311 = vmatprep.subr.mxu0 0.0
        %2312 = vmatpush1.msra.mxu0 0.0
        %2313 = vmatprep.subr.mxu0 0.0
        %2314 = vmatpush1.msra.mxu0 0.0
        %2315 = vmatprep.subr.mxu0 0.0
        %2316 = vmatpush1.msra.mxu0 0.0
        %2317 = vmatprep.subr.mxu0 0.0
        %2318 = vmatpush1.msra.mxu0 0.0
        %2319 = vmatprep.subr.mxu0 0.0
        %2320 = vmatpush1.msra.mxu0 0.0
        %2321 = vmatprep.subr.mxu0 0.0
        %2322 = vmatpush1.msra.mxu0 0.0
        %2323 = vmatprep.subr.mxu0 0.0
        %2324 = vmatpush1.msra.mxu0 0.0
        %2325 = vmatprep.subr.mxu0 0.0
        %2326 = vmatpush1.msra.mxu0 0.0
        %2327 = vmatprep.subr.mxu0 0.0
        %2328 = vmatpush1.msra.mxu0 0.0
        %2329 = vmatprep.subr.mxu0 0.0
        %2330 = vmatpush1.msra.mxu0 0.0
        %2331 = vmatprep.subr.mxu0 0.0
        %2332 = vmatpush1.msra.mxu0 0.0
        %2333 = vmatprep.subr.mxu0 0.0
        %2334 = vmatpush1.msra.mxu0 0.0
        %2335 = vmatprep.subr.mxu0 0.0
        %2336 = vmatpush1.msra.mxu0 0.0
        %2337 = vmatprep.subr.mxu0 0.0
        %2338 = vmatpush1.msra.mxu0 0.0
        %2339 = vmatprep.subr.mxu0 0.0
        %2340 = vmatpush1.msra.mxu0 0.0
        %2341 = vmatprep.subr.mxu0 0.0
        %2342 = vmatpush1.msra.mxu0 0.0
        %2343 = vmatprep.subr.mxu0 0.0
        %2344 = vmatpush1.msra.mxu0 0.0
        %2345 = vmatprep.subr.mxu0 0.0
        %2346 = vmatpush1.msra.mxu0 0.0
        %2347 = vmatprep.subr.mxu0 0.0
        %2348 = vmatpush1.msra.mxu0 0.0
        %2349 = vmatprep.subr.mxu0 0.0
        %2350 = vmatpush1.msra.mxu0 0.0
        %2351 = vmatprep.mubr.f32.mxu0 0.0
        %2352 = vmatmul.mubr.f32.gmra.mrb[0].mxu0 %v2285
        %v2353 = vpop.f32.mrb[0].mxu0
        %v2354 = vadd.f32 %v2282, %v2353
        %v2355 = vpop.f32.mrb[0].mxu0
        %2356 = vdwg.mxu0
        %v2357 = vlaneseq
        %v2358 = vshrl.u32 %v2357, 7
        %vm2359 = vcmp.lt.s32.totalorder %v2358, 3
        %v2360 = vxor.u32 %v2354, 2147483648
        %v2361 = vmul.f32 %v2360, 1.442695
        %v2362 = vpow.pop %v2361
        %v2363 = vadd.f32 %v2362, 1.0
        %v2364 = vrcp.pop %v2363
        %v2365 = vmul.f32 1.0, %v2364
        %v2366 = vmax.f32 %v2354, 0.0
        %v2367 = vsel %vm2359, %v2365, %v2366
        %2368 = vst [vmem:[%s588] sm:$0xff] %v2367
        %s2369 = sand.u32 %s401, 1
        %s2370 = scalar_lea.sflag [#allocation4], %s2369
        %s2371 = sand.u32 %s401, 1
        %s2372 = smul.addr %s2371, 8
        %s2373 = scalar_lea.vmem [#allocation3], %s2372
        // Predicated region
        $region127: #{tpu_custom_call.1} parent=121 // pred_check
          %p2374 = pneg %p411
        $region128: #{tpu_custom_call.1} parent=121 // pred_check_branch
          %2376 = sbr.rel (%p2374) target = $region130
        $region129: #{tpu_custom_call.1} parent=121 // pred_region
          %s2378 = ssub.s32 128, 128
          %2379 = vsyncadd %s2370, %s2378
          %s2380 = smul.addr %s31, 128
          %s2381 = scalar_lea.hbm %s17, %s2380
          %s2383 = sshll.u32 %s2373, 4
          %s2384 = int_to_ptr.vmem [resolvable:$true] %s2383
          %2386 = dma.vmem_to_hbm [thread:$0]  %s2384, 128, %s2381, %s2370
        $region130: #{tpu_custom_call.1} parent=121 // pred_fallthru
          _
      $region122: #{tpu_custom_call.1} parent=5 // pred_fallthru
        _
      %p2387 = scmp.le.s32.totalorder 2, %s26
      // Predicated region
      $region131: #{tpu_custom_call.1} parent=5 // pred_check
        %p2388 = pneg %p2387
      $region132: #{tpu_custom_call.1} parent=5 // pred_check_branch
        %2390 = sbr.rel (%p2388) target = $region134
      $region133: #{tpu_custom_call.1} parent=5 // pred_region
        %s2391 = ssub.s32 %s26, 2
        // Predicated region
        $region135: #{tpu_custom_call.1} parent=133 // pred_check
          %p2392 = pneg %p417
        $region136: #{tpu_custom_call.1} parent=133 // pred_check_branch
          %2394 = sbr.rel (%p2392) target = $region138
        $region137: #{tpu_custom_call.1} parent=133 // pred_region
          %s2395 = sand.u32 %s402, 1
          %s2396 = scalar_lea.sflag [#allocation4], %s2395
          %s2397 = sand.u32 %s402, 1
          %s2398 = smul.addr %s2397, 8
          %s2399 = scalar_lea.vmem [#allocation3], %s2398
          %2400 = dma.done %s2396, 128
        $region138: #{tpu_custom_call.1} parent=133 // pred_fallthru
          _
      $region134: #{tpu_custom_call.1} parent=5 // pred_fallthru
        _
    $region6: #{tpu_custom_call.1} parent=1 // loop_footer
      %s30 = sadd.s32 1, %s26
    $region7: #{tpu_custom_call.1} parent=1 // loop_footer_branch
      %25 = sbr.rel target = $region3
    $region8: #{tpu_custom_call.1} parent=1 // loop_exit
      _
    %2401 = vsyncpa [#allocation4], 1
    %s2402 = scalar_lea.sflag [#allocation4], 1
    %2403 = vsyncpa %s2402, 1

</llo_original>
